<compile_context>
chip_gen: v7x
topology: tpu7x:2x2x1
jax: 0.10.0
libtpu: 0.0.40
codegen_flags: <defaults>
</compile_context>

<pallas_src>
import math
import functools

import jax
import jax.numpy as jnp
from jax import lax
from jax.experimental import pallas as pl
from jax.experimental.pallas import tpu as pltpu


def _mha_kernel(x_ref, wq_ref, bq_ref, wk_ref, bk_ref, wv_ref, bv_ref,
                wo_ref, bo_ref, o_ref, *, n_heads, d_key, seq_len, n_batch):
    """One grid step == `n_batch` batch elements, fully fused MHA forward."""
    f32 = jnp.float32
    x = x_ref[...]                       # (n_batch*S, E), compute dtype (bf16/f32)
    cdt = x.dtype
    e_dim = o_ref.shape[-1]

    # Dense QKV projections over all rows at once (bf16 MXU, f32 accumulation).
    # Scale 1/sqrt(d_key) is already folded into Wq / bq by the wrapper.
    q = (jnp.dot(x, wq_ref[...], preferred_element_type=f32) + bq_ref[...]).astype(cdt)
    k = (jnp.dot(x, wk_ref[...], preferred_element_type=f32) + bk_ref[...]).astype(cdt)
    v = (jnp.dot(x, wv_ref[...], preferred_element_type=f32) + bv_ref[...]).astype(cdt)

    wo = wo_ref[...]                     # (H, D, E) compute dtype
    bo = bo_ref[...]                     # (1, E) f32

    for b in range(n_batch):             # static unroll over batch elements
        r0 = b * seq_len
        out_b = jnp.zeros((seq_len, e_dim), f32)
        for h in range(n_heads):         # static unroll over heads
            c0 = h * d_key
            qh = q[r0:r0 + seq_len, c0:c0 + d_key]    # (S, D) static slices
            kh = k[r0:r0 + seq_len, c0:c0 + d_key]
            vh = v[r0:r0 + seq_len, c0:c0 + d_key]

            # scores = qh @ kh^T (contraction on the minor dim, no transpose
            # materialized); the 1/sqrt(d_key) scale is pre-folded into Wq.
            s = lax.dot_general(qh, kh, (((1,), (1,)), ((), ())),
                                preferred_element_type=f32)        # (S, S) f32
            m = jnp.max(s, axis=-1, keepdims=True)
            e = jnp.exp(s - m)                                      # f32 (EUP)
            denom = jnp.sum(e, axis=-1, keepdims=True)              # (S, 1)

            # Un-normalized P @ V, then one deferred normalization via the
            # approximate EUP reciprocal.
            o_un = jnp.dot(e.astype(cdt), vh, preferred_element_type=f32)  # (S, D)
            o_h = o_un * pl.reciprocal(denom, approx=True)

            # Head merge through the output projection (no lane concat):
            # concat_h(o_h) @ Wo == sum_h o_h @ Wo[h].
            out_b = out_b + jnp.dot(o_h.astype(cdt), wo[h],
                                    preferred_element_type=f32)     # (S, E)

        o_ref[r0:r0 + seq_len, :] = (out_b + bo).astype(o_ref.dtype)


def multi_headed_attention(x, params, *, n_heads,
                           compute_dtype=jnp.bfloat16, block_b=None):
    """x: (B, S, E) f32.  params: (in,out)-layout weights, (1,out) biases."""
    B, S, E = x.shape
    assert E % n_heads == 0
    d_key = E // n_heads

    if block_b is None:
        block_b = B                       # fold the whole batch into one step
    assert B % block_b == 0
    n_rows_blk = block_b * S

    scale = 1.0 / math.sqrt(d_key)
    # Fold the attention scale into the Q projection (free, done in the wrapper).
    wq = (params["wq"] * scale).astype(compute_dtype)
    bq = (params["bq"] * scale).astype(jnp.float32)
    wk = params["wk"].astype(compute_dtype)
    bk = params["bk"].astype(jnp.float32)
    wv = params["wv"].astype(compute_dtype)
    bv = params["bv"].astype(jnp.float32)
    # Output projection weight per head: rows [h*D, (h+1)*D) -> (H, D, E).
    wo = params["wo"].reshape(n_heads, d_key, E).astype(compute_dtype)
    bo = params["bo"].astype(jnp.float32)

    x2d = x.reshape(B * S, E).astype(compute_dtype)

    kernel = functools.partial(_mha_kernel, n_heads=n_heads, d_key=d_key,
                               seq_len=S, n_batch=block_b)

    full = lambda shape: pl.BlockSpec(shape, lambda i: (0,) * len(shape))

    out2d = pl.pallas_call(
        kernel,
        out_shape=jax.ShapeDtypeStruct((B * S, E), jnp.float32),
        grid_spec=pltpu.PrefetchScalarGridSpec(
            num_scalar_prefetch=0,
            grid=(B // block_b,),
            in_specs=[
                pl.BlockSpec((n_rows_blk, E), lambda i: (i, 0)),   # x rows
                full((E, E)), full((1, E)),                        # Wq (scaled), bq
                full((E, E)), full((1, E)),                        # Wk, bk
                full((E, E)), full((1, E)),                        # Wv, bv
                full((n_heads, d_key, E)), full((1, E)),           # Wo heads, bo
            ],
            out_specs=pl.BlockSpec((n_rows_blk, E), lambda i: (i, 0)),
        ),
        compiler_params=pltpu.CompilerParams(
            dimension_semantics=("parallel",),
            vmem_limit_bytes=32 * 1024 * 1024),
    )(x2d, wq, bq, wk, bk, wv, bv, wo, bo)

    return out2d.reshape(B, S, E).astype(x.dtype)


def _reference(x, params, *, n_heads):
    """Pure-JAX f32 replica of the PyTorch forward, for verification."""
    B, S, E = x.shape
    d_key = E // n_heads
    q = x @ params["wq"] + params["bq"]
    k = x @ params["wk"] + params["bk"]
    v = x @ params["wv"] + params["bv"]
    q = q.reshape(B, S, n_heads, d_key).transpose(0, 2, 1, 3)
    k = k.reshape(B, S, n_heads, d_key).transpose(0, 2, 1, 3)
    v = v.reshape(B, S, n_heads, d_key).transpose(0, 2, 1, 3)
    scores = jnp.einsum("bhqd,bhkd->bhqk", q, k) / math.sqrt(d_key)
    p = jax.nn.softmax(scores, axis=-1)
    out = jnp.einsum("bhqk,bhkd->bhqd", p, v)
    out = out.transpose(0, 2, 1, 3).reshape(B, S, E)
    return out @ params["wo"] + params["bo"]


if __name__ == "__main__":
    B, S, E, H = 2, 8, 32, 4   # batch, seq, embed_dim, n_heads (d_key = 8)

    key = jax.random.PRNGKey(0)
    keys = jax.random.split(key, 9)

    # Same shapes as the nn.Linear layers, stored pre-transposed to (in, out);
    # biases kept as (1, out).
    def linear(kw, kb):
        bound = 1.0 / math.sqrt(E)
        w = jax.random.uniform(kw, (E, E), jnp.float32, -bound, bound)
        b = jax.random.uniform(kb, (1, E), jnp.float32, -bound, bound)
        return w, b

    wq, bq = linear(keys[0], keys[1])
    wk, bk = linear(keys[2], keys[3])
    wv, bv = linear(keys[4], keys[5])
    wo, bo = linear(keys[6], keys[7])
    params = dict(wq=wq, bq=bq, wk=wk, bk=bk, wv=wv, bv=bv, wo=wo, bo=bo)

    x = jax.random.normal(keys[8], (B, S, E), jnp.float32)

    # f32-operand path: tight check against the reference (only the approx
    # reciprocal and accumulation order differ).
    out_f32 = multi_headed_attention(x, params, n_heads=H,
                                     compute_dtype=jnp.float32)
    out_f32 = jax.block_until_ready(out_f32)

    # Default bf16-operand path (MXU-friendly on v6e/v7x), f32 accumulation.
    out_bf16 = multi_headed_attention(x, params, n_heads=H)
    out_bf16 = jax.block_until_ready(out_bf16)

    ref = _reference(x, params, n_heads=H)
    assert out_f32.shape == (B, S, E)
    assert out_bf16.shape == (B, S, E)

    err32 = float(jnp.max(jnp.abs(out_f32 - ref)))
    err16 = float(jnp.max(jnp.abs(out_bf16 - ref)))
    assert jnp.allclose(out_f32, ref, atol=1e-2, rtol=1e-2), (
        f"f32-path max abs err {err32}")
    assert jnp.allclose(out_bf16, ref, atol=5e-2, rtol=5e-2), (
        f"bf16-path max abs err {err16}")

    print("KERNEL_OK")
</pallas_src>

<mosaic_0001>
module attributes {stable_mosaic.version = 11 : i64} {
  func.func @_mha_kernel(%arg0: i32, %arg1: memref<16x32xf32, #tpu.memory_space<vmem>>, %arg2: memref<32x32xf32, #tpu.memory_space<vmem>>, %arg3: memref<1x32xf32, #tpu.memory_space<vmem>>, %arg4: memref<32x32xf32, #tpu.memory_space<vmem>>, %arg5: memref<1x32xf32, #tpu.memory_space<vmem>>, %arg6: memref<32x32xf32, #tpu.memory_space<vmem>>, %arg7: memref<1x32xf32, #tpu.memory_space<vmem>>, %arg8: memref<4x8x32xf32, #tpu.memory_space<vmem>>, %arg9: memref<1x32xf32, #tpu.memory_space<vmem>>, %arg10: memref<16x32xf32, #tpu.memory_space<vmem>>) attributes {dimension_semantics = [#tpu.dimension_semantics<parallel>], iteration_bounds = array<i64: 1>, scalar_prefetch = 0 : i64, scratch_operands = 0 : i64, tpu.core_type = #tpu.core_type<tc>, window_params = [{transform_indices = @transform_0, window_bounds = array<i64: 16, 32>}, {pipeline_mode = #tpu.pipeline_mode<synchronous>, transform_indices = @transform_1, window_bounds = array<i64: 32, 32>}, {pipeline_mode = #tpu.pipeline_mode<synchronous>, transform_indices = @transform_2, window_bounds = array<i64: 1, 32>}, {pipeline_mode = #tpu.pipeline_mode<synchronous>, transform_indices = @transform_3, window_bounds = array<i64: 32, 32>}, {pipeline_mode = #tpu.pipeline_mode<synchronous>, transform_indices = @transform_4, window_bounds = array<i64: 1, 32>}, {pipeline_mode = #tpu.pipeline_mode<synchronous>, transform_indices = @transform_5, window_bounds = array<i64: 32, 32>}, {pipeline_mode = #tpu.pipeline_mode<synchronous>, transform_indices = @transform_6, window_bounds = array<i64: 1, 32>}, {pipeline_mode = #tpu.pipeline_mode<synchronous>, transform_indices = @transform_7, window_bounds = array<i64: 4, 8, 32>}, {pipeline_mode = #tpu.pipeline_mode<synchronous>, transform_indices = @transform_8, window_bounds = array<i64: 1, 32>}, {transform_indices = @transform_9, window_bounds = array<i64: 16, 32>}]} {
    %c0 = arith.constant 0 : index
    %c0_0 = arith.constant 0 : index
    %0 = vector.load %arg1[%c0, %c0_0] : memref<16x32xf32, #tpu.memory_space<vmem>>, vector<16x32xf32>
    %c0_1 = arith.constant 0 : index
    %c0_2 = arith.constant 0 : index
    %1 = vector.load %arg2[%c0_1, %c0_2] : memref<32x32xf32, #tpu.memory_space<vmem>>, vector<32x32xf32>
    %cst = arith.constant dense<0.000000e+00> : vector<16x32xf32>
    %2 = tpu.matmul %0, %1, %cst {dimension_numbers = #tpu.dot_dimension_numbers<[1], [0], [0], [1], [0, 0, 1, 1], [], []>} : vector<16x32xf32>, vector<32x32xf32>, vector<16x32xf32> -> vector<16x32xf32>
    %c0_3 = arith.constant 0 : index
    %c0_4 = arith.constant 0 : index
    %3 = vector.load %arg3[%c0_3, %c0_4] : memref<1x32xf32, #tpu.memory_space<vmem>>, vector<1x32xf32>
    %4 = vector.broadcast %3 : vector<1x32xf32> to vector<16x32xf32>
    %5 = arith.addf %2, %4 : vector<16x32xf32>
    %c0_5 = arith.constant 0 : index
    %c0_6 = arith.constant 0 : index
    %6 = vector.load %arg4[%c0_5, %c0_6] : memref<32x32xf32, #tpu.memory_space<vmem>>, vector<32x32xf32>
    %cst_7 = arith.constant dense<0.000000e+00> : vector<16x32xf32>
    %7 = tpu.matmul %0, %6, %cst_7 {dimension_numbers = #tpu.dot_dimension_numbers<[1], [0], [0], [1], [0, 0, 1, 1], [], []>} : vector<16x32xf32>, vector<32x32xf32>, vector<16x32xf32> -> vector<16x32xf32>
    %c0_8 = arith.constant 0 : index
    %c0_9 = arith.constant 0 : index
    %8 = vector.load %arg5[%c0_8, %c0_9] : memref<1x32xf32, #tpu.memory_space<vmem>>, vector<1x32xf32>
    %9 = vector.broadcast %8 : vector<1x32xf32> to vector<16x32xf32>
    %10 = arith.addf %7, %9 : vector<16x32xf32>
    %c0_10 = arith.constant 0 : index
    %c0_11 = arith.constant 0 : index
    %11 = vector.load %arg6[%c0_10, %c0_11] : memref<32x32xf32, #tpu.memory_space<vmem>>, vector<32x32xf32>
    %cst_12 = arith.constant dense<0.000000e+00> : vector<16x32xf32>
    %12 = tpu.matmul %0, %11, %cst_12 {dimension_numbers = #tpu.dot_dimension_numbers<[1], [0], [0], [1], [0, 0, 1, 1], [], []>} : vector<16x32xf32>, vector<32x32xf32>, vector<16x32xf32> -> vector<16x32xf32>
    %c0_13 = arith.constant 0 : index
    %c0_14 = arith.constant 0 : index
    %13 = vector.load %arg7[%c0_13, %c0_14] : memref<1x32xf32, #tpu.memory_space<vmem>>, vector<1x32xf32>
    %14 = vector.broadcast %13 : vector<1x32xf32> to vector<16x32xf32>
    %15 = arith.addf %12, %14 : vector<16x32xf32>
    %c0_15 = arith.constant 0 : index
    %c0_16 = arith.constant 0 : index
    %c0_17 = arith.constant 0 : index
    %16 = vector.load %arg8[%c0_15, %c0_16, %c0_17] : memref<4x8x32xf32, #tpu.memory_space<vmem>>, vector<4x8x32xf32>
    %c0_18 = arith.constant 0 : index
    %c0_19 = arith.constant 0 : index
    %17 = vector.load %arg9[%c0_18, %c0_19] : memref<1x32xf32, #tpu.memory_space<vmem>>, vector<1x32xf32>
    %cst_20 = arith.constant 0.000000e+00 : f32
    %18 = vector.broadcast %cst_20 : f32 to vector<8x32xf32>
    %19 = vector.extract_strided_slice %5 {offsets = [0, 0], sizes = [8, 8], strides = [1, 1]} : vector<16x32xf32> to vector<8x8xf32>
    %20 = vector.extract_strided_slice %10 {offsets = [0, 0], sizes = [8, 8], strides = [1, 1]} : vector<16x32xf32> to vector<8x8xf32>
    %21 = vector.extract_strided_slice %15 {offsets = [0, 0], sizes = [8, 8], strides = [1, 1]} : vector<16x32xf32> to vector<8x8xf32>
    %cst_21 = arith.constant dense<0.000000e+00> : vector<8x8xf32>
    %22 = tpu.matmul %19, %20, %cst_21 {dimension_numbers = #tpu.dot_dimension_numbers<[1], [1], [0], [0], [0, 0, 1, 0], [], []>} : vector<8x8xf32>, vector<8x8xf32>, vector<8x8xf32> -> vector<8x8xf32>
    %cst_22 = arith.constant dense<0xFF800000> : vector<8xf32>
    %23 = vector.multi_reduction <maximumf>, %22, %cst_22 [1] : vector<8x8xf32> to vector<8xf32>
    %24 = vector.shape_cast %23 : vector<8xf32> to vector<8x1xf32>
    %25 = vector.broadcast %24 : vector<8x1xf32> to vector<8x8xf32>
    %26 = arith.subf %22, %25 : vector<8x8xf32>
    %27 = math.exp %26 : vector<8x8xf32>
    %cst_23 = arith.constant dense<0.000000e+00> : vector<8xf32>
    %28 = vector.multi_reduction <add>, %27, %cst_23 [1] : vector<8x8xf32> to vector<8xf32>
    %29 = vector.shape_cast %28 : vector<8xf32> to vector<8x1xf32>
    %cst_24 = arith.constant dense<0.000000e+00> : vector<8x8xf32>
    %30 = tpu.matmul %27, %21, %cst_24 {dimension_numbers = #tpu.dot_dimension_numbers<[1], [0], [0], [1], [0, 0, 1, 1], [], []>} : vector<8x8xf32>, vector<8x8xf32>, vector<8x8xf32> -> vector<8x8xf32>
    %31 = tpu.reciprocal %29 {approx = true} : vector<8x1xf32> -> vector<8x1xf32>
    %32 = vector.broadcast %31 : vector<8x1xf32> to vector<8x8xf32>
    %33 = arith.mulf %30, %32 : vector<8x8xf32>
    %34 = vector.extract_strided_slice %16 {offsets = [0, 0, 0], sizes = [1, 8, 32], strides = [1, 1, 1]} : vector<4x8x32xf32> to vector<1x8x32xf32>
    %35 = vector.shape_cast %34 : vector<1x8x32xf32> to vector<8x32xf32>
    %cst_25 = arith.constant dense<0.000000e+00> : vector<8x32xf32>
    %36 = tpu.matmul %33, %35, %cst_25 {dimension_numbers = #tpu.dot_dimension_numbers<[1], [0], [0], [1], [0, 0, 1, 1], [], []>} : vector<8x8xf32>, vector<8x32xf32>, vector<8x32xf32> -> vector<8x32xf32>
    %37 = arith.addf %18, %36 : vector<8x32xf32>
    %38 = vector.extract_strided_slice %5 {offsets = [0, 8], sizes = [8, 8], strides = [1, 1]} : vector<16x32xf32> to vector<8x8xf32>
    %39 = vector.extract_strided_slice %10 {offsets = [0, 8], sizes = [8, 8], strides = [1, 1]} : vector<16x32xf32> to vector<8x8xf32>
    %40 = vector.extract_strided_slice %15 {offsets = [0, 8], sizes = [8, 8], strides = [1, 1]} : vector<16x32xf32> to vector<8x8xf32>
    %cst_26 = arith.constant dense<0.000000e+00> : vector<8x8xf32>
    %41 = tpu.matmul %38, %39, %cst_26 {dimension_numbers = #tpu.dot_dimension_numbers<[1], [1], [0], [0], [0, 0, 1, 0], [], []>} : vector<8x8xf32>, vector<8x8xf32>, vector<8x8xf32> -> vector<8x8xf32>
    %cst_27 = arith.constant dense<0xFF800000> : vector<8xf32>
    %42 = vector.multi_reduction <maximumf>, %41, %cst_27 [1] : vector<8x8xf32> to vector<8xf32>
    %43 = vector.shape_cast %42 : vector<8xf32> to vector<8x1xf32>
    %44 = vector.broadcast %43 : vector<8x1xf32> to vector<8x8xf32>
    %45 = arith.subf %41, %44 : vector<8x8xf32>
    %46 = math.exp %45 : vector<8x8xf32>
    %cst_28 = arith.constant dense<0.000000e+00> : vector<8xf32>
    %47 = vector.multi_reduction <add>, %46, %cst_28 [1] : vector<8x8xf32> to vector<8xf32>
    %48 = vector.shape_cast %47 : vector<8xf32> to vector<8x1xf32>
    %cst_29 = arith.constant dense<0.000000e+00> : vector<8x8xf32>
    %49 = tpu.matmul %46, %40, %cst_29 {dimension_numbers = #tpu.dot_dimension_numbers<[1], [0], [0], [1], [0, 0, 1, 1], [], []>} : vector<8x8xf32>, vector<8x8xf32>, vector<8x8xf32> -> vector<8x8xf32>
    %50 = tpu.reciprocal %48 {approx = true} : vector<8x1xf32> -> vector<8x1xf32>
    %51 = vector.broadcast %50 : vector<8x1xf32> to vector<8x8xf32>
    %52 = arith.mulf %49, %51 : vector<8x8xf32>
    %53 = vector.extract_strided_slice %16 {offsets = [1, 0, 0], sizes = [1, 8, 32], strides = [1, 1, 1]} : vector<4x8x32xf32> to vector<1x8x32xf32>
    %54 = vector.shape_cast %53 : vector<1x8x32xf32> to vector<8x32xf32>
    %cst_30 = arith.constant dense<0.000000e+00> : vector<8x32xf32>
    %55 = tpu.matmul %52, %54, %cst_30 {dimension_numbers = #tpu.dot_dimension_numbers<[1], [0], [0], [1], [0, 0, 1, 1], [], []>} : vector<8x8xf32>, vector<8x32xf32>, vector<8x32xf32> -> vector<8x32xf32>
    %56 = arith.addf %37, %55 : vector<8x32xf32>
    %57 = vector.extract_strided_slice %5 {offsets = [0, 16], sizes = [8, 8], strides = [1, 1]} : vector<16x32xf32> to vector<8x8xf32>
    %58 = vector.extract_strided_slice %10 {offsets = [0, 16], sizes = [8, 8], strides = [1, 1]} : vector<16x32xf32> to vector<8x8xf32>
    %59 = vector.extract_strided_slice %15 {offsets = [0, 16], sizes = [8, 8], strides = [1, 1]} : vector<16x32xf32> to vector<8x8xf32>
    %cst_31 = arith.constant dense<0.000000e+00> : vector<8x8xf32>
    %60 = tpu.matmul %57, %58, %cst_31 {dimension_numbers = #tpu.dot_dimension_numbers<[1], [1], [0], [0], [0, 0, 1, 0], [], []>} : vector<8x8xf32>, vector<8x8xf32>, vector<8x8xf32> -> vector<8x8xf32>
    %cst_32 = arith.constant dense<0xFF800000> : vector<8xf32>
    %61 = vector.multi_reduction <maximumf>, %60, %cst_32 [1] : vector<8x8xf32> to vector<8xf32>
    %62 = vector.shape_cast %61 : vector<8xf32> to vector<8x1xf32>
    %63 = vector.broadcast %62 : vector<8x1xf32> to vector<8x8xf32>
    %64 = arith.subf %60, %63 : vector<8x8xf32>
    %65 = math.exp %64 : vector<8x8xf32>
    %cst_33 = arith.constant dense<0.000000e+00> : vector<8xf32>
    %66 = vector.multi_reduction <add>, %65, %cst_33 [1] : vector<8x8xf32> to vector<8xf32>
    %67 = vector.shape_cast %66 : vector<8xf32> to vector<8x1xf32>
    %cst_34 = arith.constant dense<0.000000e+00> : vector<8x8xf32>
    %68 = tpu.matmul %65, %59, %cst_34 {dimension_numbers = #tpu.dot_dimension_numbers<[1], [0], [0], [1], [0, 0, 1, 1], [], []>} : vector<8x8xf32>, vector<8x8xf32>, vector<8x8xf32> -> vector<8x8xf32>
    %69 = tpu.reciprocal %67 {approx = true} : vector<8x1xf32> -> vector<8x1xf32>
    %70 = vector.broadcast %69 : vector<8x1xf32> to vector<8x8xf32>
    %71 = arith.mulf %68, %70 : vector<8x8xf32>
    %72 = vector.extract_strided_slice %16 {offsets = [2, 0, 0], sizes = [1, 8, 32], strides = [1, 1, 1]} : vector<4x8x32xf32> to vector<1x8x32xf32>
    %73 = vector.shape_cast %72 : vector<1x8x32xf32> to vector<8x32xf32>
    %cst_35 = arith.constant dense<0.000000e+00> : vector<8x32xf32>
    %74 = tpu.matmul %71, %73, %cst_35 {dimension_numbers = #tpu.dot_dimension_numbers<[1], [0], [0], [1], [0, 0, 1, 1], [], []>} : vector<8x8xf32>, vector<8x32xf32>, vector<8x32xf32> -> vector<8x32xf32>
    %75 = arith.addf %56, %74 : vector<8x32xf32>
    %76 = vector.extract_strided_slice %5 {offsets = [0, 24], sizes = [8, 8], strides = [1, 1]} : vector<16x32xf32> to vector<8x8xf32>
    %77 = vector.extract_strided_slice %10 {offsets = [0, 24], sizes = [8, 8], strides = [1, 1]} : vector<16x32xf32> to vector<8x8xf32>
    %78 = vector.extract_strided_slice %15 {offsets = [0, 24], sizes = [8, 8], strides = [1, 1]} : vector<16x32xf32> to vector<8x8xf32>
    %cst_36 = arith.constant dense<0.000000e+00> : vector<8x8xf32>
    %79 = tpu.matmul %76, %77, %cst_36 {dimension_numbers = #tpu.dot_dimension_numbers<[1], [1], [0], [0], [0, 0, 1, 0], [], []>} : vector<8x8xf32>, vector<8x8xf32>, vector<8x8xf32> -> vector<8x8xf32>
    %cst_37 = arith.constant dense<0xFF800000> : vector<8xf32>
    %80 = vector.multi_reduction <maximumf>, %79, %cst_37 [1] : vector<8x8xf32> to vector<8xf32>
    %81 = vector.shape_cast %80 : vector<8xf32> to vector<8x1xf32>
    %82 = vector.broadcast %81 : vector<8x1xf32> to vector<8x8xf32>
    %83 = arith.subf %79, %82 : vector<8x8xf32>
    %84 = math.exp %83 : vector<8x8xf32>
    %cst_38 = arith.constant dense<0.000000e+00> : vector<8xf32>
    %85 = vector.multi_reduction <add>, %84, %cst_38 [1] : vector<8x8xf32> to vector<8xf32>
    %86 = vector.shape_cast %85 : vector<8xf32> to vector<8x1xf32>
    %cst_39 = arith.constant dense<0.000000e+00> : vector<8x8xf32>
    %87 = tpu.matmul %84, %78, %cst_39 {dimension_numbers = #tpu.dot_dimension_numbers<[1], [0], [0], [1], [0, 0, 1, 1], [], []>} : vector<8x8xf32>, vector<8x8xf32>, vector<8x8xf32> -> vector<8x8xf32>
    %88 = tpu.reciprocal %86 {approx = true} : vector<8x1xf32> -> vector<8x1xf32>
    %89 = vector.broadcast %88 : vector<8x1xf32> to vector<8x8xf32>
    %90 = arith.mulf %87, %89 : vector<8x8xf32>
    %91 = vector.extract_strided_slice %16 {offsets = [3, 0, 0], sizes = [1, 8, 32], strides = [1, 1, 1]} : vector<4x8x32xf32> to vector<1x8x32xf32>
    %92 = vector.shape_cast %91 : vector<1x8x32xf32> to vector<8x32xf32>
    %cst_40 = arith.constant dense<0.000000e+00> : vector<8x32xf32>
    %93 = tpu.matmul %90, %92, %cst_40 {dimension_numbers = #tpu.dot_dimension_numbers<[1], [0], [0], [1], [0, 0, 1, 1], [], []>} : vector<8x8xf32>, vector<8x32xf32>, vector<8x32xf32> -> vector<8x32xf32>
    %94 = arith.addf %75, %93 : vector<8x32xf32>
    %95 = vector.broadcast %17 : vector<1x32xf32> to vector<8x32xf32>
    %96 = arith.addf %94, %95 : vector<8x32xf32>
    %c0_41 = arith.constant 0 : index
    %c0_42 = arith.constant 0 : index
    %97 = vector.load %arg10[%c0_41, %c0_42] : memref<16x32xf32, #tpu.memory_space<vmem>>, vector<8x32xf32>
    tpu.vector_store %arg10[%c0_41, %c0_42], %96 {strides = array<i32>} : memref<16x32xf32, #tpu.memory_space<vmem>>, vector<8x32xf32>,
    %cst_43 = arith.constant 0.000000e+00 : f32
    %98 = vector.broadcast %cst_43 : f32 to vector<8x32xf32>
    %99 = vector.extract_strided_slice %5 {offsets = [8, 0], sizes = [8, 8], strides = [1, 1]} : vector<16x32xf32> to vector<8x8xf32>
    %100 = vector.extract_strided_slice %10 {offsets = [8, 0], sizes = [8, 8], strides = [1, 1]} : vector<16x32xf32> to vector<8x8xf32>
    %101 = vector.extract_strided_slice %15 {offsets = [8, 0], sizes = [8, 8], strides = [1, 1]} : vector<16x32xf32> to vector<8x8xf32>
    %cst_44 = arith.constant dense<0.000000e+00> : vector<8x8xf32>
    %102 = tpu.matmul %99, %100, %cst_44 {dimension_numbers = #tpu.dot_dimension_numbers<[1], [1], [0], [0], [0, 0, 1, 0], [], []>} : vector<8x8xf32>, vector<8x8xf32>, vector<8x8xf32> -> vector<8x8xf32>
    %cst_45 = arith.constant dense<0xFF800000> : vector<8xf32>
    %103 = vector.multi_reduction <maximumf>, %102, %cst_45 [1] : vector<8x8xf32> to vector<8xf32>
    %104 = vector.shape_cast %103 : vector<8xf32> to vector<8x1xf32>
    %105 = vector.broadcast %104 : vector<8x1xf32> to vector<8x8xf32>
    %106 = arith.subf %102, %105 : vector<8x8xf32>
    %107 = math.exp %106 : vector<8x8xf32>
    %cst_46 = arith.constant dense<0.000000e+00> : vector<8xf32>
    %108 = vector.multi_reduction <add>, %107, %cst_46 [1] : vector<8x8xf32> to vector<8xf32>
    %109 = vector.shape_cast %108 : vector<8xf32> to vector<8x1xf32>
    %cst_47 = arith.constant dense<0.000000e+00> : vector<8x8xf32>
    %110 = tpu.matmul %107, %101, %cst_47 {dimension_numbers = #tpu.dot_dimension_numbers<[1], [0], [0], [1], [0, 0, 1, 1], [], []>} : vector<8x8xf32>, vector<8x8xf32>, vector<8x8xf32> -> vector<8x8xf32>
    %111 = tpu.reciprocal %109 {approx = true} : vector<8x1xf32> -> vector<8x1xf32>
    %112 = vector.broadcast %111 : vector<8x1xf32> to vector<8x8xf32>
    %113 = arith.mulf %110, %112 : vector<8x8xf32>
    %114 = vector.extract_strided_slice %16 {offsets = [0, 0, 0], sizes = [1, 8, 32], strides = [1, 1, 1]} : vector<4x8x32xf32> to vector<1x8x32xf32>
    %115 = vector.shape_cast %114 : vector<1x8x32xf32> to vector<8x32xf32>
    %cst_48 = arith.constant dense<0.000000e+00> : vector<8x32xf32>
    %116 = tpu.matmul %113, %115, %cst_48 {dimension_numbers = #tpu.dot_dimension_numbers<[1], [0], [0], [1], [0, 0, 1, 1], [], []>} : vector<8x8xf32>, vector<8x32xf32>, vector<8x32xf32> -> vector<8x32xf32>
    %117 = arith.addf %98, %116 : vector<8x32xf32>
    %118 = vector.extract_strided_slice %5 {offsets = [8, 8], sizes = [8, 8], strides = [1, 1]} : vector<16x32xf32> to vector<8x8xf32>
    %119 = vector.extract_strided_slice %10 {offsets = [8, 8], sizes = [8, 8], strides = [1, 1]} : vector<16x32xf32> to vector<8x8xf32>
    %120 = vector.extract_strided_slice %15 {offsets = [8, 8], sizes = [8, 8], strides = [1, 1]} : vector<16x32xf32> to vector<8x8xf32>
    %cst_49 = arith.constant dense<0.000000e+00> : vector<8x8xf32>
    %121 = tpu.matmul %118, %119, %cst_49 {dimension_numbers = #tpu.dot_dimension_numbers<[1], [1], [0], [0], [0, 0, 1, 0], [], []>} : vector<8x8xf32>, vector<8x8xf32>, vector<8x8xf32> -> vector<8x8xf32>
    %cst_50 = arith.constant dense<0xFF800000> : vector<8xf32>
    %122 = vector.multi_reduction <maximumf>, %121, %cst_50 [1] : vector<8x8xf32> to vector<8xf32>
    %123 = vector.shape_cast %122 : vector<8xf32> to vector<8x1xf32>
    %124 = vector.broadcast %123 : vector<8x1xf32> to vector<8x8xf32>
    %125 = arith.subf %121, %124 : vector<8x8xf32>
    %126 = math.exp %125 : vector<8x8xf32>
    %cst_51 = arith.constant dense<0.000000e+00> : vector<8xf32>
    %127 = vector.multi_reduction <add>, %126, %cst_51 [1] : vector<8x8xf32> to vector<8xf32>
    %128 = vector.shape_cast %127 : vector<8xf32> to vector<8x1xf32>
    %cst_52 = arith.constant dense<0.000000e+00> : vector<8x8xf32>
    %129 = tpu.matmul %126, %120, %cst_52 {dimension_numbers = #tpu.dot_dimension_numbers<[1], [0], [0], [1], [0, 0, 1, 1], [], []>} : vector<8x8xf32>, vector<8x8xf32>, vector<8x8xf32> -> vector<8x8xf32>
    %130 = tpu.reciprocal %128 {approx = true} : vector<8x1xf32> -> vector<8x1xf32>
    %131 = vector.broadcast %130 : vector<8x1xf32> to vector<8x8xf32>
    %132 = arith.mulf %129, %131 : vector<8x8xf32>
    %133 = vector.extract_strided_slice %16 {offsets = [1, 0, 0], sizes = [1, 8, 32], strides = [1, 1, 1]} : vector<4x8x32xf32> to vector<1x8x32xf32>
    %134 = vector.shape_cast %133 : vector<1x8x32xf32> to vector<8x32xf32>
    %cst_53 = arith.constant dense<0.000000e+00> : vector<8x32xf32>
    %135 = tpu.matmul %132, %134, %cst_53 {dimension_numbers = #tpu.dot_dimension_numbers<[1], [0], [0], [1], [0, 0, 1, 1], [], []>} : vector<8x8xf32>, vector<8x32xf32>, vector<8x32xf32> -> vector<8x32xf32>
    %136 = arith.addf %117, %135 : vector<8x32xf32>
    %137 = vector.extract_strided_slice %5 {offsets = [8, 16], sizes = [8, 8], strides = [1, 1]} : vector<16x32xf32> to vector<8x8xf32>
    %138 = vector.extract_strided_slice %10 {offsets = [8, 16], sizes = [8, 8], strides = [1, 1]} : vector<16x32xf32> to vector<8x8xf32>
    %139 = vector.extract_strided_slice %15 {offsets = [8, 16], sizes = [8, 8], strides = [1, 1]} : vector<16x32xf32> to vector<8x8xf32>
    %cst_54 = arith.constant dense<0.000000e+00> : vector<8x8xf32>
    %140 = tpu.matmul %137, %138, %cst_54 {dimension_numbers = #tpu.dot_dimension_numbers<[1], [1], [0], [0], [0, 0, 1, 0], [], []>} : vector<8x8xf32>, vector<8x8xf32>, vector<8x8xf32> -> vector<8x8xf32>
    %cst_55 = arith.constant dense<0xFF800000> : vector<8xf32>
    %141 = vector.multi_reduction <maximumf>, %140, %cst_55 [1] : vector<8x8xf32> to vector<8xf32>
    %142 = vector.shape_cast %141 : vector<8xf32> to vector<8x1xf32>
    %143 = vector.broadcast %142 : vector<8x1xf32> to vector<8x8xf32>
    %144 = arith.subf %140, %143 : vector<8x8xf32>
    %145 = math.exp %144 : vector<8x8xf32>
    %cst_56 = arith.constant dense<0.000000e+00> : vector<8xf32>
    %146 = vector.multi_reduction <add>, %145, %cst_56 [1] : vector<8x8xf32> to vector<8xf32>
    %147 = vector.shape_cast %146 : vector<8xf32> to vector<8x1xf32>
    %cst_57 = arith.constant dense<0.000000e+00> : vector<8x8xf32>
    %148 = tpu.matmul %145, %139, %cst_57 {dimension_numbers = #tpu.dot_dimension_numbers<[1], [0], [0], [1], [0, 0, 1, 1], [], []>} : vector<8x8xf32>, vector<8x8xf32>, vector<8x8xf32> -> vector<8x8xf32>
    %149 = tpu.reciprocal %147 {approx = true} : vector<8x1xf32> -> vector<8x1xf32>
    %150 = vector.broadcast %149 : vector<8x1xf32> to vector<8x8xf32>
    %151 = arith.mulf %148, %150 : vector<8x8xf32>
    %152 = vector.extract_strided_slice %16 {offsets = [2, 0, 0], sizes = [1, 8, 32], strides = [1, 1, 1]} : vector<4x8x32xf32> to vector<1x8x32xf32>
    %153 = vector.shape_cast %152 : vector<1x8x32xf32> to vector<8x32xf32>
    %cst_58 = arith.constant dense<0.000000e+00> : vector<8x32xf32>
    %154 = tpu.matmul %151, %153, %cst_58 {dimension_numbers = #tpu.dot_dimension_numbers<[1], [0], [0], [1], [0, 0, 1, 1], [], []>} : vector<8x8xf32>, vector<8x32xf32>, vector<8x32xf32> -> vector<8x32xf32>
    %155 = arith.addf %136, %154 : vector<8x32xf32>
    %156 = vector.extract_strided_slice %5 {offsets = [8, 24], sizes = [8, 8], strides = [1, 1]} : vector<16x32xf32> to vector<8x8xf32>
    %157 = vector.extract_strided_slice %10 {offsets = [8, 24], sizes = [8, 8], strides = [1, 1]} : vector<16x32xf32> to vector<8x8xf32>
    %158 = vector.extract_strided_slice %15 {offsets = [8, 24], sizes = [8, 8], strides = [1, 1]} : vector<16x32xf32> to vector<8x8xf32>
    %cst_59 = arith.constant dense<0.000000e+00> : vector<8x8xf32>
    %159 = tpu.matmul %156, %157, %cst_59 {dimension_numbers = #tpu.dot_dimension_numbers<[1], [1], [0], [0], [0, 0, 1, 0], [], []>} : vector<8x8xf32>, vector<8x8xf32>, vector<8x8xf32> -> vector<8x8xf32>
    %cst_60 = arith.constant dense<0xFF800000> : vector<8xf32>
    %160 = vector.multi_reduction <maximumf>, %159, %cst_60 [1] : vector<8x8xf32> to vector<8xf32>
    %161 = vector.shape_cast %160 : vector<8xf32> to vector<8x1xf32>
    %162 = vector.broadcast %161 : vector<8x1xf32> to vector<8x8xf32>
    %163 = arith.subf %159, %162 : vector<8x8xf32>
    %164 = math.exp %163 : vector<8x8xf32>
    %cst_61 = arith.constant dense<0.000000e+00> : vector<8xf32>
    %165 = vector.multi_reduction <add>, %164, %cst_61 [1] : vector<8x8xf32> to vector<8xf32>
    %166 = vector.shape_cast %165 : vector<8xf32> to vector<8x1xf32>
    %cst_62 = arith.constant dense<0.000000e+00> : vector<8x8xf32>
    %167 = tpu.matmul %164, %158, %cst_62 {dimension_numbers = #tpu.dot_dimension_numbers<[1], [0], [0], [1], [0, 0, 1, 1], [], []>} : vector<8x8xf32>, vector<8x8xf32>, vector<8x8xf32> -> vector<8x8xf32>
    %168 = tpu.reciprocal %166 {approx = true} : vector<8x1xf32> -> vector<8x1xf32>
    %169 = vector.broadcast %168 : vector<8x1xf32> to vector<8x8xf32>
    %170 = arith.mulf %167, %169 : vector<8x8xf32>
    %171 = vector.extract_strided_slice %16 {offsets = [3, 0, 0], sizes = [1, 8, 32], strides = [1, 1, 1]} : vector<4x8x32xf32> to vector<1x8x32xf32>
    %172 = vector.shape_cast %171 : vector<1x8x32xf32> to vector<8x32xf32>
    %cst_63 = arith.constant dense<0.000000e+00> : vector<8x32xf32>
    %173 = tpu.matmul %170, %172, %cst_63 {dimension_numbers = #tpu.dot_dimension_numbers<[1], [0], [0], [1], [0, 0, 1, 1], [], []>} : vector<8x8xf32>, vector<8x32xf32>, vector<8x32xf32> -> vector<8x32xf32>
    %174 = arith.addf %155, %173 : vector<8x32xf32>
    %175 = vector.broadcast %17 : vector<1x32xf32> to vector<8x32xf32>
    %176 = arith.addf %174, %175 : vector<8x32xf32>
    %c8 = arith.constant 8 : index
    %c0_64 = arith.constant 0 : index
    %177 = vector.load %arg10[%c8, %c0_64] : memref<16x32xf32, #tpu.memory_space<vmem>>, vector<8x32xf32>
    tpu.vector_store %arg10[%c8, %c0_64], %176 {strides = array<i32>} : memref<16x32xf32, #tpu.memory_space<vmem>>, vector<8x32xf32>,
    return
  }
  func.func @transform_0(%arg0: i32) -> (i32, i32) {
    %c0_i32 = arith.constant 0 : i32
    %c0_i32_0 = arith.constant 0 : i32
    return %arg0, %c0_i32 : i32, i32
  }
  func.func @transform_1(%arg0: i32) -> (i32, i32) {
    %c0_i32 = arith.constant 0 : i32
    %c0_i32_0 = arith.constant 0 : i32
    %c0_i32_1 = arith.constant 0 : i32
    return %c0_i32, %c0_i32_0 : i32, i32
  }
  func.func @transform_2(%arg0: i32) -> (i32, i32) {
    %c0_i32 = arith.constant 0 : i32
    %c0_i32_0 = arith.constant 0 : i32
    %c0_i32_1 = arith.constant 0 : i32
    return %c0_i32, %c0_i32_0 : i32, i32
  }
  func.func @transform_3(%arg0: i32) -> (i32, i32) {
    %c0_i32 = arith.constant 0 : i32
    %c0_i32_0 = arith.constant 0 : i32
    %c0_i32_1 = arith.constant 0 : i32
    return %c0_i32, %c0_i32_0 : i32, i32
  }
  func.func @transform_4(%arg0: i32) -> (i32, i32) {
    %c0_i32 = arith.constant 0 : i32
    %c0_i32_0 = arith.constant 0 : i32
    %c0_i32_1 = arith.constant 0 : i32
    return %c0_i32, %c0_i32_0 : i32, i32
  }
  func.func @transform_5(%arg0: i32) -> (i32, i32) {
    %c0_i32 = arith.constant 0 : i32
    %c0_i32_0 = arith.constant 0 : i32
    %c0_i32_1 = arith.constant 0 : i32
    return %c0_i32, %c0_i32_0 : i32, i32
  }
  func.func @transform_6(%arg0: i32) -> (i32, i32) {
    %c0_i32 = arith.constant 0 : i32
    %c0_i32_0 = arith.constant 0 : i32
    %c0_i32_1 = arith.constant 0 : i32
    return %c0_i32, %c0_i32_0 : i32, i32
  }
  func.func @transform_7(%arg0: i32) -> (i32, i32, i32) {
    %c0_i32 = arith.constant 0 : i32
    %c0_i32_0 = arith.constant 0 : i32
    %c0_i32_1 = arith.constant 0 : i32
    %c0_i32_2 = arith.constant 0 : i32
    return %c0_i32, %c0_i32_0, %c0_i32_1 : i32, i32, i32
  }
  func.func @transform_8(%arg0: i32) -> (i32, i32) {
    %c0_i32 = arith.constant 0 : i32
    %c0_i32_0 = arith.constant 0 : i32
    %c0_i32_1 = arith.constant 0 : i32
    return %c0_i32, %c0_i32_0 : i32, i32
  }
  func.func @transform_9(%arg0: i32) -> (i32, i32) {
    %c0_i32 = arith.constant 0 : i32
    %c0_i32_0 = arith.constant 0 : i32
    return %arg0, %c0_i32 : i32, i32
  }
}

</mosaic_0001>

<llo_original>
// kernel: tpu_custom_call.1
$region0: #{tpu_custom_call.1}
  #allocation0 [shape = 'u32[]', space=smem, size = 0x4, offset = 0x4, fixed_abs, tag = 'smem constant byte address 0x4 - core index']
  #allocation1 [shape = 'u32[144,128]{1,0:T(1,128)}', space=vmem, size = 0x12000, scoped, tag = 'internal scratch']
  %s0 = inlined_call_operand.hbm [shape: f32[16,32], index: 0, kind: input, shape index: {}]
  %s1 = inlined_call_operand.hbm [shape: f32[32,32], index: 1, kind: input, shape index: {}]
  %s2 = inlined_call_operand.vmem [shape: f32[1,32], index: 2, kind: input, shape index: {}]
  %s3 = inlined_call_operand.hbm [shape: f32[32,32], index: 3, kind: input, shape index: {}]
  %s4 = inlined_call_operand.vmem [shape: f32[1,32], index: 4, kind: input, shape index: {}]
  %s5 = inlined_call_operand.hbm [shape: f32[32,32], index: 5, kind: input, shape index: {}]
  %s6 = inlined_call_operand.vmem [shape: f32[1,32], index: 6, kind: input, shape index: {}]
  %s7 = inlined_call_operand.hbm [shape: f32[4,8,32], index: 7, kind: input, shape index: {}]
  %s8 = inlined_call_operand.vmem [shape: f32[1,32], index: 8, kind: input, shape index: {}]
  %s9 = inlined_call_operand.hbm [shape: f32[16,32], index: 9, kind: output, shape index: {}]
  %s10 = sld [smem:[#allocation0]]
  $region66: #{tpu_custom_call.1} parent=0
    _
  %s12 = ssub.s32 1, %s10
  %s13 = scalar_select 0, %s12, %s10
  $region1: #{tpu_custom_call.1} parent=0
    #allocation2 [shape = 'u8[8192]{0}', space=vmem, size = 0x2000, scoped, tag = 'input window, operand 0, single buffered']
    #allocation3 [shape = 's32[1]{0}', space=sflag, size = 0x4, scoped, tag = 'scoped memory for tpu_custom_call.1']
    #allocation4 [shape = 's32[1]{0}', space=sflag, size = 0x4, scoped, tag = 'scoped memory for tpu_custom_call.1']
    #allocation5 [shape = 'u8[16384]{0}', space=vmem, size = 0x4000, scoped, tag = 'input window, operand 1, single buffered']
    #allocation6 [shape = 's32[1]{0}', space=sflag, size = 0x4, scoped, tag = 'scoped memory for tpu_custom_call.1']
    #allocation7 [shape = 'u8[16384]{0}', space=vmem, size = 0x4000, scoped, tag = 'input window, operand 3, single buffered']
    #allocation8 [shape = 'u8[16384]{0}', space=vmem, size = 0x4000, scoped, tag = 'input window, operand 5, single buffered']
    #allocation9 [shape = 's32[1]{0}', space=sflag, size = 0x4, scoped, tag = 'scoped memory for tpu_custom_call.1']
    #allocation10 [shape = 'u8[16384]{0}', space=vmem, size = 0x4000, scoped, tag = 'input window, operand 7, single buffered']
    #allocation11 [shape = 'u8[8192]{0}', space=vmem, size = 0x2000, scoped, tag = 'output window, operand 0, single buffered']
    %14 = vsyncpa [#allocation3], 0
    %15 = vsyncpa [#allocation6], 0
    %16 = vsyncpa [#allocation9], 0
    %17 = vsyncpa [#allocation4], 0
    // Predicated region
    $region2: #{tpu_custom_call.1} parent=1 // pred_check
      _
    $region3: #{tpu_custom_call.1} parent=1 // pred_check_branch
      %19 = sbr.rel (0) target = $region5
    $region4: #{tpu_custom_call.1} parent=1 // pred_region
      %s21 = ssub.s32 256, 256
      %22 = vsyncadd [#allocation3], %s21
      %s23 = sshll.u32 [#allocation2], 4
      %s24 = int_to_ptr.vmem [resolvable:$true] %s23
      %29 = dma.hbm_to_vmem [thread:$0]  %s0, 256, %s24, [#allocation3], 128, 128, 8
    $region5: #{tpu_custom_call.1} parent=1 // pred_fallthru
      _
    // Predicated region
    $region6: #{tpu_custom_call.1} parent=1 // pred_check
      _
    $region7: #{tpu_custom_call.1} parent=1 // pred_check_branch
      %31 = sbr.rel (0) target = $region9
    $region8: #{tpu_custom_call.1} parent=1 // pred_region
      %s33 = ssub.s32 512, 512
      %34 = vsyncadd [#allocation6], %s33
      %s35 = sshll.u32 [#allocation5], 4
      %s36 = int_to_ptr.vmem [resolvable:$true] %s35
      %41 = dma.hbm_to_vmem [thread:$0]  %s1, 512, %s36, [#allocation6], 128, 128, 8
    $region9: #{tpu_custom_call.1} parent=1 // pred_fallthru
      _
    // Predicated region
    $region10: #{tpu_custom_call.1} parent=1 // pred_check
      _
    $region11: #{tpu_custom_call.1} parent=1 // pred_check_branch
      %43 = sbr.rel (0) target = $region13
    $region12: #{tpu_custom_call.1} parent=1 // pred_region
      _
    $region13: #{tpu_custom_call.1} parent=1 // pred_fallthru
      _
    // Predicated region
    $region14: #{tpu_custom_call.1} parent=1 // pred_check
      _
    $region15: #{tpu_custom_call.1} parent=1 // pred_check_branch
      %45 = sbr.rel (0) target = $region17
    $region16: #{tpu_custom_call.1} parent=1 // pred_region
      %s47 = ssub.s32 512, 512
      %48 = vsyncadd [#allocation6], %s47
      %s49 = sshll.u32 [#allocation7], 4
      %s50 = int_to_ptr.vmem [resolvable:$true] %s49
      %55 = dma.hbm_to_vmem [thread:$0]  %s3, 512, %s50, [#allocation6], 128, 128, 8
    $region17: #{tpu_custom_call.1} parent=1 // pred_fallthru
      _
    // Predicated region
    $region18: #{tpu_custom_call.1} parent=1 // pred_check
      _
    $region19: #{tpu_custom_call.1} parent=1 // pred_check_branch
      %57 = sbr.rel (0) target = $region21
    $region20: #{tpu_custom_call.1} parent=1 // pred_region
      _
    $region21: #{tpu_custom_call.1} parent=1 // pred_fallthru
      _
    // Predicated region
    $region22: #{tpu_custom_call.1} parent=1 // pred_check
      _
    $region23: #{tpu_custom_call.1} parent=1 // pred_check_branch
      %59 = sbr.rel (0) target = $region25
    $region24: #{tpu_custom_call.1} parent=1 // pred_region
      %s61 = ssub.s32 512, 512
      %62 = vsyncadd [#allocation9], %s61
      %s63 = sshll.u32 [#allocation8], 4
      %s64 = int_to_ptr.vmem [resolvable:$true] %s63
      %69 = dma.hbm_to_vmem [thread:$0]  %s5, 512, %s64, [#allocation9], 128, 128, 8
    $region25: #{tpu_custom_call.1} parent=1 // pred_fallthru
      _
    // Predicated region
    $region26: #{tpu_custom_call.1} parent=1 // pred_check
      _
    $region27: #{tpu_custom_call.1} parent=1 // pred_check_branch
      %71 = sbr.rel (0) target = $region29
    $region28: #{tpu_custom_call.1} parent=1 // pred_region
      _
    $region29: #{tpu_custom_call.1} parent=1 // pred_fallthru
      _
    // Predicated region
    $region30: #{tpu_custom_call.1} parent=1 // pred_check
      _
    $region31: #{tpu_custom_call.1} parent=1 // pred_check_branch
      %73 = sbr.rel (0) target = $region33
    $region32: #{tpu_custom_call.1} parent=1 // pred_region
      %s75 = ssub.s32 512, 512
      %76 = vsyncadd [#allocation9], %s75
      %s77 = sshll.u32 [#allocation10], 4
      %s78 = int_to_ptr.vmem [resolvable:$true] %s77
      %83 = dma.hbm_to_vmem [thread:$0]  %s7, 512, %s78, [#allocation9], 128, 128, 8
    $region33: #{tpu_custom_call.1} parent=1 // pred_fallthru
      _
    // Predicated region
    $region34: #{tpu_custom_call.1} parent=1 // pred_check
      _
    $region35: #{tpu_custom_call.1} parent=1 // pred_check_branch
      %85 = sbr.rel (0) target = $region37
    $region36: #{tpu_custom_call.1} parent=1 // pred_region
      _
    $region37: #{tpu_custom_call.1} parent=1 // pred_fallthru
      _
    // Predicated region
    $region38: #{tpu_custom_call.1} parent=1 // pred_check
      _
    $region39: #{tpu_custom_call.1} parent=1 // pred_check_branch
      %87 = sbr.rel (0) target = $region41
    $region40: #{tpu_custom_call.1} parent=1 // pred_region
      %88 = dma.done [#allocation3], 256
    $region41: #{tpu_custom_call.1} parent=1 // pred_fallthru
      _
    // Predicated region
    $region42: #{tpu_custom_call.1} parent=1 // pred_check
      _
    $region43: #{tpu_custom_call.1} parent=1 // pred_check_branch
      %90 = sbr.rel (0) target = $region45
    $region44: #{tpu_custom_call.1} parent=1 // pred_region
      %91 = dma.done [#allocation6], 512
    $region45: #{tpu_custom_call.1} parent=1 // pred_fallthru
      _
    // Predicated region
    $region46: #{tpu_custom_call.1} parent=1 // pred_check
      _
    $region47: #{tpu_custom_call.1} parent=1 // pred_check_branch
      %93 = sbr.rel (0) target = $region49
    $region48: #{tpu_custom_call.1} parent=1 // pred_region
      %94 = dma.done [#allocation6], 512
    $region49: #{tpu_custom_call.1} parent=1 // pred_fallthru
      _
    // Predicated region
    $region50: #{tpu_custom_call.1} parent=1 // pred_check
      _
    $region51: #{tpu_custom_call.1} parent=1 // pred_check_branch
      %96 = sbr.rel (0) target = $region53
    $region52: #{tpu_custom_call.1} parent=1 // pred_region
      %97 = dma.done [#allocation9], 512
    $region53: #{tpu_custom_call.1} parent=1 // pred_fallthru
      _
    // Predicated region
    $region54: #{tpu_custom_call.1} parent=1 // pred_check
      _
    $region55: #{tpu_custom_call.1} parent=1 // pred_check_branch
      %99 = sbr.rel (0) target = $region57
    $region56: #{tpu_custom_call.1} parent=1 // pred_region
      %100 = dma.done [#allocation9], 512
    $region57: #{tpu_custom_call.1} parent=1 // pred_fallthru
      _
    %v101 = vld [vmem:[#allocation2] sm:$0xff]
    %v102 = vld [vmem:[#allocation2 + $0x8] sm:$0xff]
    %v103 = vld [vmem:[#allocation5] sm:$0xff]
    %v104 = vld [vmem:[#allocation5 + $0x8] sm:$0xff]
    %v105 = vld [vmem:[#allocation5 + $0x10] sm:$0xff]
    %v106 = vld [vmem:[#allocation5 + $0x18] sm:$0xff]
    %v107 = vld [vmem:[%s2] sm:$0x1]
    %v109 = vlaneseq
    %v110 = vshrl.u32 %v109, 7
    %v111 = vsub.s32 0, %v110
    %v112 = vrot.slane %v107, %v111
    %vm114 = vcmask 261120
    %v116 = vsel %vm114, %v101, 0
    %v119 = vsel %vm114, %v102, 0
    %121 = vmatprep.subr.mxu0 0.0
    %122 = vmatpush1.msra.mxu0 %v103
    %123 = vmatprep.subr.mxu0 0.0
    %124 = vmatpush1.msra.mxu0 %v104
    %125 = vmatprep.subr.mxu0 0.0
    %126 = vmatpush1.msra.mxu0 %v105
    %127 = vmatprep.subr.mxu0 0.0
    %128 = vmatpush1.msra.mxu0 %v106
    %129 = vmatprep.subr.mxu0 0.0
    %130 = vmatpush1.msra.mxu0 0.0
    %131 = vmatprep.subr.mxu0 0.0
    %132 = vmatpush1.msra.mxu0 0.0
    %133 = vmatprep.subr.mxu0 0.0
    %134 = vmatpush1.msra.mxu0 0.0
    %135 = vmatprep.subr.mxu0 0.0
    %136 = vmatpush1.msra.mxu0 0.0
    %137 = vmatprep.subr.mxu0 0.0
    %138 = vmatpush1.msra.mxu0 0.0
    %139 = vmatprep.subr.mxu0 0.0
    %140 = vmatpush1.msra.mxu0 0.0
    %141 = vmatprep.subr.mxu0 0.0
    %142 = vmatpush1.msra.mxu0 0.0
    %143 = vmatprep.subr.mxu0 0.0
    %144 = vmatpush1.msra.mxu0 0.0
    %145 = vmatprep.subr.mxu0 0.0
    %146 = vmatpush1.msra.mxu0 0.0
    %147 = vmatprep.subr.mxu0 0.0
    %148 = vmatpush1.msra.mxu0 0.0
    %149 = vmatprep.subr.mxu0 0.0
    %150 = vmatpush1.msra.mxu0 0.0
    %151 = vmatprep.subr.mxu0 0.0
    %152 = vmatpush1.msra.mxu0 0.0
    %153 = vmatprep.subr.mxu0 0.0
    %154 = vmatpush1.msra.mxu0 0.0
    %155 = vmatprep.subr.mxu0 0.0
    %156 = vmatpush1.msra.mxu0 0.0
    %157 = vmatprep.subr.mxu0 0.0
    %158 = vmatpush1.msra.mxu0 0.0
    %159 = vmatprep.subr.mxu0 0.0
    %160 = vmatpush1.msra.mxu0 0.0
    %161 = vmatprep.subr.mxu0 0.0
    %162 = vmatpush1.msra.mxu0 0.0
    %163 = vmatprep.subr.mxu0 0.0
    %164 = vmatpush1.msra.mxu0 0.0
    %165 = vmatprep.subr.mxu0 0.0
    %166 = vmatpush1.msra.mxu0 0.0
    %167 = vmatprep.subr.mxu0 0.0
    %168 = vmatpush1.msra.mxu0 0.0
    %169 = vmatprep.subr.mxu0 0.0
    %170 = vmatpush1.msra.mxu0 0.0
    %171 = vmatprep.subr.mxu0 0.0
    %172 = vmatpush1.msra.mxu0 0.0
    %173 = vmatprep.subr.mxu0 0.0
    %174 = vmatpush1.msra.mxu0 0.0
    %175 = vmatprep.subr.mxu0 0.0
    %176 = vmatpush1.msra.mxu0 0.0
    %177 = vmatprep.subr.mxu0 0.0
    %178 = vmatpush1.msra.mxu0 0.0
    %179 = vmatprep.subr.mxu0 0.0
    %180 = vmatpush1.msra.mxu0 0.0
    %181 = vmatprep.subr.mxu0 0.0
    %182 = vmatpush1.msra.mxu0 0.0
    %183 = vmatprep.subr.mxu0 0.0
    %184 = vmatpush1.msra.mxu0 0.0
    %185 = vmatprep.mubr.f32.mxu0 0.0
    %186 = vmatmul.mubr.f32.gmra.mrb[0].mxu0 %v116
    %v187 = vpop.f32.mrb[0].mxu0
    %v188 = vadd.f32 %v112, %v187
    %v189 = vpop.f32.mrb[0].mxu0
    %190 = vmatprep.mubr.f32.mxu0 0.0
    %191 = vmatmul.mubr.f32.gmra.mrb[0].mxu0 %v119
    %v192 = vpop.f32.mrb[0].mxu0
    %v193 = vadd.f32 %v112, %v192
    %v194 = vpop.f32.mrb[0].mxu0
    %195 = vdwg.mxu0
    %v196 = vld [vmem:[#allocation7] sm:$0xff]
    %v197 = vld [vmem:[#allocation7 + $0x8] sm:$0xff]
    %v198 = vld [vmem:[#allocation7 + $0x10] sm:$0xff]
    %v199 = vld [vmem:[#allocation7 + $0x18] sm:$0xff]
    %v200 = vld [vmem:[%s4] sm:$0x1]
    %v202 = vlaneseq
    %v203 = vshrl.u32 %v202, 7
    %v204 = vsub.s32 0, %v203
    %v205 = vrot.slane %v200, %v204
    %207 = vmatprep.subr.mxu0 0.0
    %208 = vmatpush1.msra.mxu0 %v196
    %209 = vmatprep.subr.mxu0 0.0
    %210 = vmatpush1.msra.mxu0 %v197
    %211 = vmatprep.subr.mxu0 0.0
    %212 = vmatpush1.msra.mxu0 %v198
    %213 = vmatprep.subr.mxu0 0.0
    %214 = vmatpush1.msra.mxu0 %v199
    %215 = vmatprep.subr.mxu0 0.0
    %216 = vmatpush1.msra.mxu0 0.0
    %217 = vmatprep.subr.mxu0 0.0
    %218 = vmatpush1.msra.mxu0 0.0
    %219 = vmatprep.subr.mxu0 0.0
    %220 = vmatpush1.msra.mxu0 0.0
    %221 = vmatprep.subr.mxu0 0.0
    %222 = vmatpush1.msra.mxu0 0.0
    %223 = vmatprep.subr.mxu0 0.0
    %224 = vmatpush1.msra.mxu0 0.0
    %225 = vmatprep.subr.mxu0 0.0
    %226 = vmatpush1.msra.mxu0 0.0
    %227 = vmatprep.subr.mxu0 0.0
    %228 = vmatpush1.msra.mxu0 0.0
    %229 = vmatprep.subr.mxu0 0.0
    %230 = vmatpush1.msra.mxu0 0.0
    %231 = vmatprep.subr.mxu0 0.0
    %232 = vmatpush1.msra.mxu0 0.0
    %233 = vmatprep.subr.mxu0 0.0
    %234 = vmatpush1.msra.mxu0 0.0
    %235 = vmatprep.subr.mxu0 0.0
    %236 = vmatpush1.msra.mxu0 0.0
    %237 = vmatprep.subr.mxu0 0.0
    %238 = vmatpush1.msra.mxu0 0.0
    %239 = vmatprep.subr.mxu0 0.0
    %240 = vmatpush1.msra.mxu0 0.0
    %241 = vmatprep.subr.mxu0 0.0
    %242 = vmatpush1.msra.mxu0 0.0
    %243 = vmatprep.subr.mxu0 0.0
    %244 = vmatpush1.msra.mxu0 0.0
    %245 = vmatprep.subr.mxu0 0.0
    %246 = vmatpush1.msra.mxu0 0.0
    %247 = vmatprep.subr.mxu0 0.0
    %248 = vmatpush1.msra.mxu0 0.0
    %249 = vmatprep.subr.mxu0 0.0
    %250 = vmatpush1.msra.mxu0 0.0
    %251 = vmatprep.subr.mxu0 0.0
    %252 = vmatpush1.msra.mxu0 0.0
    %253 = vmatprep.subr.mxu0 0.0
    %254 = vmatpush1.msra.mxu0 0.0
    %255 = vmatprep.subr.mxu0 0.0
    %256 = vmatpush1.msra.mxu0 0.0
    %257 = vmatprep.subr.mxu0 0.0
    %258 = vmatpush1.msra.mxu0 0.0
    %259 = vmatprep.subr.mxu0 0.0
    %260 = vmatpush1.msra.mxu0 0.0
    %261 = vmatprep.subr.mxu0 0.0
    %262 = vmatpush1.msra.mxu0 0.0
    %263 = vmatprep.subr.mxu0 0.0
    %264 = vmatpush1.msra.mxu0 0.0
    %265 = vmatprep.subr.mxu0 0.0
    %266 = vmatpush1.msra.mxu0 0.0
    %267 = vmatprep.subr.mxu0 0.0
    %268 = vmatpush1.msra.mxu0 0.0
    %269 = vmatprep.subr.mxu0 0.0
    %270 = vmatpush1.msra.mxu0 0.0
    %271 = vmatprep.mubr.f32.mxu0 0.0
    %272 = vmatmul.mubr.f32.gmra.mrb[0].mxu0 %v116
    %v273 = vpop.f32.mrb[0].mxu0
    %v274 = vadd.f32 %v205, %v273
    %v275 = vpop.f32.mrb[0].mxu0
    %276 = vmatprep.mubr.f32.mxu0 0.0
    %277 = vmatmul.mubr.f32.gmra.mrb[0].mxu0 %v119
    %v278 = vpop.f32.mrb[0].mxu0
    %v279 = vadd.f32 %v205, %v278
    %v280 = vpop.f32.mrb[0].mxu0
    %281 = vdwg.mxu0
    %v282 = vld [vmem:[#allocation8] sm:$0xff]
    %v283 = vld [vmem:[#allocation8 + $0x8] sm:$0xff]
    %v284 = vld [vmem:[#allocation8 + $0x10] sm:$0xff]
    %v285 = vld [vmem:[#allocation8 + $0x18] sm:$0xff]
    %v286 = vld [vmem:[%s6] sm:$0x1]
    %v288 = vlaneseq
    %v289 = vshrl.u32 %v288, 7
    %v290 = vsub.s32 0, %v289
    %v291 = vrot.slane %v286, %v290
    %293 = vmatprep.subr.mxu0 0.0
    %294 = vmatpush1.msra.mxu0 %v282
    %295 = vmatprep.subr.mxu0 0.0
    %296 = vmatpush1.msra.mxu0 %v283
    %297 = vmatprep.subr.mxu0 0.0
    %298 = vmatpush1.msra.mxu0 %v284
    %299 = vmatprep.subr.mxu0 0.0
    %300 = vmatpush1.msra.mxu0 %v285
    %301 = vmatprep.subr.mxu0 0.0
    %302 = vmatpush1.msra.mxu0 0.0
    %303 = vmatprep.subr.mxu0 0.0
    %304 = vmatpush1.msra.mxu0 0.0
    %305 = vmatprep.subr.mxu0 0.0
    %306 = vmatpush1.msra.mxu0 0.0
    %307 = vmatprep.subr.mxu0 0.0
    %308 = vmatpush1.msra.mxu0 0.0
    %309 = vmatprep.subr.mxu0 0.0
    %310 = vmatpush1.msra.mxu0 0.0
    %311 = vmatprep.subr.mxu0 0.0
    %312 = vmatpush1.msra.mxu0 0.0
    %313 = vmatprep.subr.mxu0 0.0
    %314 = vmatpush1.msra.mxu0 0.0
    %315 = vmatprep.subr.mxu0 0.0
    %316 = vmatpush1.msra.mxu0 0.0
    %317 = vmatprep.subr.mxu0 0.0
    %318 = vmatpush1.msra.mxu0 0.0
    %319 = vmatprep.subr.mxu0 0.0
    %320 = vmatpush1.msra.mxu0 0.0
    %321 = vmatprep.subr.mxu0 0.0
    %322 = vmatpush1.msra.mxu0 0.0
    %323 = vmatprep.subr.mxu0 0.0
    %324 = vmatpush1.msra.mxu0 0.0
    %325 = vmatprep.subr.mxu0 0.0
    %326 = vmatpush1.msra.mxu0 0.0
    %327 = vmatprep.subr.mxu0 0.0
    %328 = vmatpush1.msra.mxu0 0.0
    %329 = vmatprep.subr.mxu0 0.0
    %330 = vmatpush1.msra.mxu0 0.0
    %331 = vmatprep.subr.mxu0 0.0
    %332 = vmatpush1.msra.mxu0 0.0
    %333 = vmatprep.subr.mxu0 0.0
    %334 = vmatpush1.msra.mxu0 0.0
    %335 = vmatprep.subr.mxu0 0.0
    %336 = vmatpush1.msra.mxu0 0.0
    %337 = vmatprep.subr.mxu0 0.0
    %338 = vmatpush1.msra.mxu0 0.0
    %339 = vmatprep.subr.mxu0 0.0
    %340 = vmatpush1.msra.mxu0 0.0
    %341 = vmatprep.subr.mxu0 0.0
    %342 = vmatpush1.msra.mxu0 0.0
    %343 = vmatprep.subr.mxu0 0.0
    %344 = vmatpush1.msra.mxu0 0.0
    %345 = vmatprep.subr.mxu0 0.0
    %346 = vmatpush1.msra.mxu0 0.0
    %347 = vmatprep.subr.mxu0 0.0
    %348 = vmatpush1.msra.mxu0 0.0
    %349 = vmatprep.subr.mxu0 0.0
    %350 = vmatpush1.msra.mxu0 0.0
    %351 = vmatprep.subr.mxu0 0.0
    %352 = vmatpush1.msra.mxu0 0.0
    %353 = vmatprep.subr.mxu0 0.0
    %354 = vmatpush1.msra.mxu0 0.0
    %355 = vmatprep.subr.mxu0 0.0
    %356 = vmatpush1.msra.mxu0 0.0
    %357 = vmatprep.mubr.f32.mxu0 0.0
    %358 = vmatmul.mubr.f32.gmra.mrb[0].mxu0 %v116
    %v359 = vpop.f32.mrb[0].mxu0
    %v360 = vadd.f32 %v291, %v359
    %v361 = vpop.f32.mrb[0].mxu0
    %362 = vmatprep.mubr.f32.mxu0 0.0
    %363 = vmatmul.mubr.f32.gmra.mrb[0].mxu0 %v119
    %v364 = vpop.f32.mrb[0].mxu0
    %v365 = vadd.f32 %v291, %v364
    %v366 = vpop.f32.mrb[0].mxu0
    %367 = vdwg.mxu0
    %v368 = vld [vmem:[#allocation10] sm:$0xff]
    %v369 = vld [vmem:[#allocation10 + $0x8] sm:$0xff]
    %v370 = vld [vmem:[#allocation10 + $0x10] sm:$0xff]
    %v371 = vld [vmem:[#allocation10 + $0x18] sm:$0xff]
    %v372 = vld [vmem:[%s8] sm:$0x1]
    %vm373 = vcmask 64512
    %v375 = vsel %vm373, %v188, 0
    %v378 = vsel %vm373, %v274, 0
    %380 = vmatprep.subr.mxu0 0.0
    %381 = vmatpush1.xpose.msra.mxu0 %v378
    %382 = vmatprep.subr.mxu0 0.0
    %383 = vmatpush1.xpose.msra.mxu0 0.0
    %384 = vmatprep.subr.mxu0 0.0
    %385 = vmatpush1.xpose.msra.mxu0 0.0
    %386 = vmatprep.subr.mxu0 0.0
    %387 = vmatpush1.xpose.msra.mxu0 0.0
    %388 = vmatprep.subr.mxu0 0.0
    %389 = vmatpush1.xpose.msra.mxu0 0.0
    %390 = vmatprep.subr.mxu0 0.0
    %391 = vmatpush1.xpose.msra.mxu0 0.0
    %392 = vmatprep.subr.mxu0 0.0
    %393 = vmatpush1.xpose.msra.mxu0 0.0
    %394 = vmatprep.subr.mxu0 0.0
    %395 = vmatpush1.xpose.msra.mxu0 0.0
    %396 = vmatprep.subr.mxu0 0.0
    %397 = vmatpush1.xpose.msra.mxu0 0.0
    %398 = vmatprep.subr.mxu0 0.0
    %399 = vmatpush1.xpose.msra.mxu0 0.0
    %400 = vmatprep.subr.mxu0 0.0
    %401 = vmatpush1.xpose.msra.mxu0 0.0
    %402 = vmatprep.subr.mxu0 0.0
    %403 = vmatpush1.xpose.msra.mxu0 0.0
    %404 = vmatprep.subr.mxu0 0.0
    %405 = vmatpush1.xpose.msra.mxu0 0.0
    %406 = vmatprep.subr.mxu0 0.0
    %407 = vmatpush1.xpose.msra.mxu0 0.0
    %408 = vmatprep.subr.mxu0 0.0
    %409 = vmatpush1.xpose.msra.mxu0 0.0
    %410 = vmatprep.subr.mxu0 0.0
    %411 = vmatpush1.xpose.msra.mxu0 0.0
    %412 = vmatprep.subr.mxu0 0.0
    %413 = vmatpush1.xpose.msra.mxu0 0.0
    %414 = vmatprep.subr.mxu0 0.0
    %415 = vmatpush1.xpose.msra.mxu0 0.0
    %416 = vmatprep.subr.mxu0 0.0
    %417 = vmatpush1.xpose.msra.mxu0 0.0
    %418 = vmatprep.subr.mxu0 0.0
    %419 = vmatpush1.xpose.msra.mxu0 0.0
    %420 = vmatprep.subr.mxu0 0.0
    %421 = vmatpush1.xpose.msra.mxu0 0.0
    %422 = vmatprep.subr.mxu0 0.0
    %423 = vmatpush1.xpose.msra.mxu0 0.0
    %424 = vmatprep.subr.mxu0 0.0
    %425 = vmatpush1.xpose.msra.mxu0 0.0
    %426 = vmatprep.subr.mxu0 0.0
    %427 = vmatpush1.xpose.msra.mxu0 0.0
    %428 = vmatprep.subr.mxu0 0.0
    %429 = vmatpush1.xpose.msra.mxu0 0.0
    %430 = vmatprep.subr.mxu0 0.0
    %431 = vmatpush1.xpose.msra.mxu0 0.0
    %432 = vmatprep.subr.mxu0 0.0
    %433 = vmatpush1.xpose.msra.mxu0 0.0
    %434 = vmatprep.subr.mxu0 0.0
    %435 = vmatpush1.xpose.msra.mxu0 0.0
    %436 = vmatprep.subr.mxu0 0.0
    %437 = vmatpush1.xpose.msra.mxu0 0.0
    %438 = vmatprep.subr.mxu0 0.0
    %439 = vmatpush1.xpose.msra.mxu0 0.0
    %440 = vmatprep.subr.mxu0 0.0
    %441 = vmatpush1.xpose.msra.mxu0 0.0
    %442 = vmatprep.subr.mxu0 0.0
    %443 = vmatpush1.xpose.msra.mxu0 0.0
    %444 = vmatprep.mubr.f32.mxu0 0.0
    %445 = vmatmul.mubr.f32.gmra.mrb[0].mxu0 %v375
    %v446 = vpop.f32.mrb[0].mxu0
    %v447 = vadd.f32 0.0, %v446
    %v448 = vpop.f32.mrb[0].mxu0
    %449 = vdwg.mxu0
    %v450 = vsel %vm373, %v447, -inf
    %451 = vmax.xlane.f32.xlu0 %v450
    %v452 = vpop.xlane.xlu0 %451
    %v453 = vsub.f32 %v447, %v452
    %v454 = vmul.f32 %v453, 1.442695
    %v455 = vpow.pop %v454
    %v456 = vsel %vm373, %v455, 0.0
    %457 = vadd.xlane.f32.xlu0 %v456
    %v458 = vpop.xlane.xlu0 %457
    %v460 = vsel %vm373, %v455, 0
    %462 = vmatprep.subr.mxu0 0.0
    %463 = vmatpush1.msra.mxu0 %v360
    %464 = vmatprep.subr.mxu0 0.0
    %465 = vmatpush1.msra.mxu0 0.0
    %466 = vmatprep.subr.mxu0 0.0
    %467 = vmatpush1.msra.mxu0 0.0
    %468 = vmatprep.subr.mxu0 0.0
    %469 = vmatpush1.msra.mxu0 0.0
    %470 = vmatprep.subr.mxu0 0.0
    %471 = vmatpush1.msra.mxu0 0.0
    %472 = vmatprep.subr.mxu0 0.0
    %473 = vmatpush1.msra.mxu0 0.0
    %474 = vmatprep.subr.mxu0 0.0
    %475 = vmatpush1.msra.mxu0 0.0
    %476 = vmatprep.subr.mxu0 0.0
    %477 = vmatpush1.msra.mxu0 0.0
    %478 = vmatprep.subr.mxu0 0.0
    %479 = vmatpush1.msra.mxu0 0.0
    %480 = vmatprep.subr.mxu0 0.0
    %481 = vmatpush1.msra.mxu0 0.0
    %482 = vmatprep.subr.mxu0 0.0
    %483 = vmatpush1.msra.mxu0 0.0
    %484 = vmatprep.subr.mxu0 0.0
    %485 = vmatpush1.msra.mxu0 0.0
    %486 = vmatprep.subr.mxu0 0.0
    %487 = vmatpush1.msra.mxu0 0.0
    %488 = vmatprep.subr.mxu0 0.0
    %489 = vmatpush1.msra.mxu0 0.0
    %490 = vmatprep.subr.mxu0 0.0
    %491 = vmatpush1.msra.mxu0 0.0
    %492 = vmatprep.subr.mxu0 0.0
    %493 = vmatpush1.msra.mxu0 0.0
    %494 = vmatprep.subr.mxu0 0.0
    %495 = vmatpush1.msra.mxu0 0.0
    %496 = vmatprep.subr.mxu0 0.0
    %497 = vmatpush1.msra.mxu0 0.0
    %498 = vmatprep.subr.mxu0 0.0
    %499 = vmatpush1.msra.mxu0 0.0
    %500 = vmatprep.subr.mxu0 0.0
    %501 = vmatpush1.msra.mxu0 0.0
    %502 = vmatprep.subr.mxu0 0.0
    %503 = vmatpush1.msra.mxu0 0.0
    %504 = vmatprep.subr.mxu0 0.0
    %505 = vmatpush1.msra.mxu0 0.0
    %506 = vmatprep.subr.mxu0 0.0
    %507 = vmatpush1.msra.mxu0 0.0
    %508 = vmatprep.subr.mxu0 0.0
    %509 = vmatpush1.msra.mxu0 0.0
    %510 = vmatprep.subr.mxu0 0.0
    %511 = vmatpush1.msra.mxu0 0.0
    %512 = vmatprep.subr.mxu0 0.0
    %513 = vmatpush1.msra.mxu0 0.0
    %514 = vmatprep.subr.mxu0 0.0
    %515 = vmatpush1.msra.mxu0 0.0
    %516 = vmatprep.subr.mxu0 0.0
    %517 = vmatpush1.msra.mxu0 0.0
    %518 = vmatprep.subr.mxu0 0.0
    %519 = vmatpush1.msra.mxu0 0.0
    %520 = vmatprep.subr.mxu0 0.0
    %521 = vmatpush1.msra.mxu0 0.0
    %522 = vmatprep.subr.mxu0 0.0
    %523 = vmatpush1.msra.mxu0 0.0
    %524 = vmatprep.subr.mxu0 0.0
    %525 = vmatpush1.msra.mxu0 0.0
    %526 = vmatprep.mubr.f32.mxu0 0.0
    %527 = vmatmul.mubr.f32.gmra.mrb[0].mxu0 %v460
    %v528 = vpop.f32.mrb[0].mxu0
    %v529 = vadd.f32 0.0, %v528
    %v530 = vpop.f32.mrb[0].mxu0
    %531 = vdwg.mxu0
    %v532 = vrcp.pop %v458
    %v533 = vmul.f32 %v529, %v532
    %534 = vrot.lane.b32.xlu0 %v188, 120
    %v535 = vpop.permute.xlu0 %534
    %536 = vrot.lane.b32.xlu0 %v274, 120
    %v537 = vpop.permute.xlu0 %536
    %v538 = vsel %vm373, %v535, 0
    %v540 = vsel %vm373, %v537, 0
    %542 = vmatprep.subr.mxu0 0.0
    %543 = vmatpush1.xpose.msra.mxu0 %v540
    %544 = vmatprep.subr.mxu0 0.0
    %545 = vmatpush1.xpose.msra.mxu0 0.0
    %546 = vmatprep.subr.mxu0 0.0
    %547 = vmatpush1.xpose.msra.mxu0 0.0
    %548 = vmatprep.subr.mxu0 0.0
    %549 = vmatpush1.xpose.msra.mxu0 0.0
    %550 = vmatprep.subr.mxu0 0.0
    %551 = vmatpush1.xpose.msra.mxu0 0.0
    %552 = vmatprep.subr.mxu0 0.0
    %553 = vmatpush1.xpose.msra.mxu0 0.0
    %554 = vmatprep.subr.mxu0 0.0
    %555 = vmatpush1.xpose.msra.mxu0 0.0
    %556 = vmatprep.subr.mxu0 0.0
    %557 = vmatpush1.xpose.msra.mxu0 0.0
    %558 = vmatprep.subr.mxu0 0.0
    %559 = vmatpush1.xpose.msra.mxu0 0.0
    %560 = vmatprep.subr.mxu0 0.0
    %561 = vmatpush1.xpose.msra.mxu0 0.0
    %562 = vmatprep.subr.mxu0 0.0
    %563 = vmatpush1.xpose.msra.mxu0 0.0
    %564 = vmatprep.subr.mxu0 0.0
    %565 = vmatpush1.xpose.msra.mxu0 0.0
    %566 = vmatprep.subr.mxu0 0.0
    %567 = vmatpush1.xpose.msra.mxu0 0.0
    %568 = vmatprep.subr.mxu0 0.0
    %569 = vmatpush1.xpose.msra.mxu0 0.0
    %570 = vmatprep.subr.mxu0 0.0
    %571 = vmatpush1.xpose.msra.mxu0 0.0
    %572 = vmatprep.subr.mxu0 0.0
    %573 = vmatpush1.xpose.msra.mxu0 0.0
    %574 = vmatprep.subr.mxu0 0.0
    %575 = vmatpush1.xpose.msra.mxu0 0.0
    %576 = vmatprep.subr.mxu0 0.0
    %577 = vmatpush1.xpose.msra.mxu0 0.0
    %578 = vmatprep.subr.mxu0 0.0
    %579 = vmatpush1.xpose.msra.mxu0 0.0
    %580 = vmatprep.subr.mxu0 0.0
    %581 = vmatpush1.xpose.msra.mxu0 0.0
    %582 = vmatprep.subr.mxu0 0.0
    %583 = vmatpush1.xpose.msra.mxu0 0.0
    %584 = vmatprep.subr.mxu0 0.0
    %585 = vmatpush1.xpose.msra.mxu0 0.0
    %586 = vmatprep.subr.mxu0 0.0
    %587 = vmatpush1.xpose.msra.mxu0 0.0
    %588 = vmatprep.subr.mxu0 0.0
    %589 = vmatpush1.xpose.msra.mxu0 0.0
    %590 = vmatprep.subr.mxu0 0.0
    %591 = vmatpush1.xpose.msra.mxu0 0.0
    %592 = vmatprep.subr.mxu0 0.0
    %593 = vmatpush1.xpose.msra.mxu0 0.0
    %594 = vmatprep.subr.mxu0 0.0
    %595 = vmatpush1.xpose.msra.mxu0 0.0
    %596 = vmatprep.subr.mxu0 0.0
    %597 = vmatpush1.xpose.msra.mxu0 0.0
    %598 = vmatprep.subr.mxu0 0.0
    %599 = vmatpush1.xpose.msra.mxu0 0.0
    %600 = vmatprep.subr.mxu0 0.0
    %601 = vmatpush1.xpose.msra.mxu0 0.0
    %602 = vmatprep.subr.mxu0 0.0
    %603 = vmatpush1.xpose.msra.mxu0 0.0
    %604 = vmatprep.subr.mxu0 0.0
    %605 = vmatpush1.xpose.msra.mxu0 0.0
    %606 = vmatprep.mubr.f32.mxu0 0.0
    %607 = vmatmul.mubr.f32.gmra.mrb[0].mxu0 %v538
    %v608 = vpop.f32.mrb[0].mxu0
    %v609 = vadd.f32 0.0, %v608
    %v610 = vpop.f32.mrb[0].mxu0
    %611 = vdwg.mxu0
    %v612 = vsel %vm373, %v609, -inf
    %613 = vmax.xlane.f32.xlu0 %v612
    %v614 = vpop.xlane.xlu0 %613
    %v615 = vsub.f32 %v609, %v614
    %v616 = vmul.f32 %v615, 1.442695
    %v617 = vpow.pop %v616
    %v618 = vsel %vm373, %v617, 0.0
    %619 = vadd.xlane.f32.xlu0 %v618
    %v620 = vpop.xlane.xlu0 %619
    %622 = vrot.lane.b32.xlu0 %v360, 120
    %v623 = vpop.permute.xlu0 %622
    %v626 = vsel %vm373, %v617, 0
    %628 = vmatprep.subr.mxu0 0.0
    %629 = vmatpush1.msra.mxu0 %v623
    %630 = vmatprep.subr.mxu0 0.0
    %631 = vmatpush1.msra.mxu0 0.0
    %632 = vmatprep.subr.mxu0 0.0
    %633 = vmatpush1.msra.mxu0 0.0
    %634 = vmatprep.subr.mxu0 0.0
    %635 = vmatpush1.msra.mxu0 0.0
    %636 = vmatprep.subr.mxu0 0.0
    %637 = vmatpush1.msra.mxu0 0.0
    %638 = vmatprep.subr.mxu0 0.0
    %639 = vmatpush1.msra.mxu0 0.0
    %640 = vmatprep.subr.mxu0 0.0
    %641 = vmatpush1.msra.mxu0 0.0
    %642 = vmatprep.subr.mxu0 0.0
    %643 = vmatpush1.msra.mxu0 0.0
    %644 = vmatprep.subr.mxu0 0.0
    %645 = vmatpush1.msra.mxu0 0.0
    %646 = vmatprep.subr.mxu0 0.0
    %647 = vmatpush1.msra.mxu0 0.0
    %648 = vmatprep.subr.mxu0 0.0
    %649 = vmatpush1.msra.mxu0 0.0
    %650 = vmatprep.subr.mxu0 0.0
    %651 = vmatpush1.msra.mxu0 0.0
    %652 = vmatprep.subr.mxu0 0.0
    %653 = vmatpush1.msra.mxu0 0.0
    %654 = vmatprep.subr.mxu0 0.0
    %655 = vmatpush1.msra.mxu0 0.0
    %656 = vmatprep.subr.mxu0 0.0
    %657 = vmatpush1.msra.mxu0 0.0
    %658 = vmatprep.subr.mxu0 0.0
    %659 = vmatpush1.msra.mxu0 0.0
    %660 = vmatprep.subr.mxu0 0.0
    %661 = vmatpush1.msra.mxu0 0.0
    %662 = vmatprep.subr.mxu0 0.0
    %663 = vmatpush1.msra.mxu0 0.0
    %664 = vmatprep.subr.mxu0 0.0
    %665 = vmatpush1.msra.mxu0 0.0
    %666 = vmatprep.subr.mxu0 0.0
    %667 = vmatpush1.msra.mxu0 0.0
    %668 = vmatprep.subr.mxu0 0.0
    %669 = vmatpush1.msra.mxu0 0.0
    %670 = vmatprep.subr.mxu0 0.0
    %671 = vmatpush1.msra.mxu0 0.0
    %672 = vmatprep.subr.mxu0 0.0
    %673 = vmatpush1.msra.mxu0 0.0
    %674 = vmatprep.subr.mxu0 0.0
    %675 = vmatpush1.msra.mxu0 0.0
    %676 = vmatprep.subr.mxu0 0.0
    %677 = vmatpush1.msra.mxu0 0.0
    %678 = vmatprep.subr.mxu0 0.0
    %679 = vmatpush1.msra.mxu0 0.0
    %680 = vmatprep.subr.mxu0 0.0
    %681 = vmatpush1.msra.mxu0 0.0
    %682 = vmatprep.subr.mxu0 0.0
    %683 = vmatpush1.msra.mxu0 0.0
    %684 = vmatprep.subr.mxu0 0.0
    %685 = vmatpush1.msra.mxu0 0.0
    %686 = vmatprep.subr.mxu0 0.0
    %687 = vmatpush1.msra.mxu0 0.0
    %688 = vmatprep.subr.mxu0 0.0
    %689 = vmatpush1.msra.mxu0 0.0
    %690 = vmatprep.subr.mxu0 0.0
    %691 = vmatpush1.msra.mxu0 0.0
    %692 = vmatprep.mubr.f32.mxu0 0.0
    %693 = vmatmul.mubr.f32.gmra.mrb[0].mxu0 %v626
    %v694 = vpop.f32.mrb[0].mxu0
    %v695 = vadd.f32 0.0, %v694
    %v696 = vpop.f32.mrb[0].mxu0
    %697 = vdwg.mxu0
    %v698 = vrcp.pop %v620
    %v699 = vmul.f32 %v695, %v698
    %v701 = vsel %vm373, %v699, 0
    %703 = vmatprep.subr.mxu0 0.0
    %704 = vmatpush1.msra.mxu0 %v369
    %705 = vmatprep.subr.mxu0 0.0
    %706 = vmatpush1.msra.mxu0 0.0
    %707 = vmatprep.subr.mxu0 0.0
    %708 = vmatpush1.msra.mxu0 0.0
    %709 = vmatprep.subr.mxu0 0.0
    %710 = vmatpush1.msra.mxu0 0.0
    %711 = vmatprep.subr.mxu0 0.0
    %712 = vmatpush1.msra.mxu0 0.0
    %713 = vmatprep.subr.mxu0 0.0
    %714 = vmatpush1.msra.mxu0 0.0
    %715 = vmatprep.subr.mxu0 0.0
    %716 = vmatpush1.msra.mxu0 0.0
    %717 = vmatprep.subr.mxu0 0.0
    %718 = vmatpush1.msra.mxu0 0.0
    %719 = vmatprep.subr.mxu0 0.0
    %720 = vmatpush1.msra.mxu0 0.0
    %721 = vmatprep.subr.mxu0 0.0
    %722 = vmatpush1.msra.mxu0 0.0
    %723 = vmatprep.subr.mxu0 0.0
    %724 = vmatpush1.msra.mxu0 0.0
    %725 = vmatprep.subr.mxu0 0.0
    %726 = vmatpush1.msra.mxu0 0.0
    %727 = vmatprep.subr.mxu0 0.0
    %728 = vmatpush1.msra.mxu0 0.0
    %729 = vmatprep.subr.mxu0 0.0
    %730 = vmatpush1.msra.mxu0 0.0
    %731 = vmatprep.subr.mxu0 0.0
    %732 = vmatpush1.msra.mxu0 0.0
    %733 = vmatprep.subr.mxu0 0.0
    %734 = vmatpush1.msra.mxu0 0.0
    %735 = vmatprep.subr.mxu0 0.0
    %736 = vmatpush1.msra.mxu0 0.0
    %737 = vmatprep.subr.mxu0 0.0
    %738 = vmatpush1.msra.mxu0 0.0
    %739 = vmatprep.subr.mxu0 0.0
    %740 = vmatpush1.msra.mxu0 0.0
    %741 = vmatprep.subr.mxu0 0.0
    %742 = vmatpush1.msra.mxu0 0.0
    %743 = vmatprep.subr.mxu0 0.0
    %744 = vmatpush1.msra.mxu0 0.0
    %745 = vmatprep.subr.mxu0 0.0
    %746 = vmatpush1.msra.mxu0 0.0
    %747 = vmatprep.subr.mxu0 0.0
    %748 = vmatpush1.msra.mxu0 0.0
    %749 = vmatprep.subr.mxu0 0.0
    %750 = vmatpush1.msra.mxu0 0.0
    %751 = vmatprep.subr.mxu0 0.0
    %752 = vmatpush1.msra.mxu0 0.0
    %753 = vmatprep.subr.mxu0 0.0
    %754 = vmatpush1.msra.mxu0 0.0
    %755 = vmatprep.subr.mxu0 0.0
    %756 = vmatpush1.msra.mxu0 0.0
    %757 = vmatprep.subr.mxu0 0.0
    %758 = vmatpush1.msra.mxu0 0.0
    %759 = vmatprep.subr.mxu0 0.0
    %760 = vmatpush1.msra.mxu0 0.0
    %761 = vmatprep.subr.mxu0 0.0
    %762 = vmatpush1.msra.mxu0 0.0
    %763 = vmatprep.subr.mxu0 0.0
    %764 = vmatpush1.msra.mxu0 0.0
    %765 = vmatprep.subr.mxu0 0.0
    %766 = vmatpush1.msra.mxu0 0.0
    %767 = vmatprep.mubr.f32.mxu0 0.0
    %768 = vmatmul.mubr.f32.gmra.mrb[0].mxu0 %v701
    %v769 = vpop.f32.mrb[0].mxu0
    %v770 = vadd.f32 0.0, %v769
    %v771 = vpop.f32.mrb[0].mxu0
    %772 = vdwg.mxu0
    %v774 = vsel %vm373, %v533, 0
    %776 = vmatprep.subr.mxu0 0.0
    %777 = vmatpush1.msra.mxu0 %v368
    %778 = vmatprep.subr.mxu0 0.0
    %779 = vmatpush1.msra.mxu0 0.0
    %780 = vmatprep.subr.mxu0 0.0
    %781 = vmatpush1.msra.mxu0 0.0
    %782 = vmatprep.subr.mxu0 0.0
    %783 = vmatpush1.msra.mxu0 0.0
    %784 = vmatprep.subr.mxu0 0.0
    %785 = vmatpush1.msra.mxu0 0.0
    %786 = vmatprep.subr.mxu0 0.0
    %787 = vmatpush1.msra.mxu0 0.0
    %788 = vmatprep.subr.mxu0 0.0
    %789 = vmatpush1.msra.mxu0 0.0
    %790 = vmatprep.subr.mxu0 0.0
    %791 = vmatpush1.msra.mxu0 0.0
    %792 = vmatprep.subr.mxu0 0.0
    %793 = vmatpush1.msra.mxu0 0.0
    %794 = vmatprep.subr.mxu0 0.0
    %795 = vmatpush1.msra.mxu0 0.0
    %796 = vmatprep.subr.mxu0 0.0
    %797 = vmatpush1.msra.mxu0 0.0
    %798 = vmatprep.subr.mxu0 0.0
    %799 = vmatpush1.msra.mxu0 0.0
    %800 = vmatprep.subr.mxu0 0.0
    %801 = vmatpush1.msra.mxu0 0.0
    %802 = vmatprep.subr.mxu0 0.0
    %803 = vmatpush1.msra.mxu0 0.0
    %804 = vmatprep.subr.mxu0 0.0
    %805 = vmatpush1.msra.mxu0 0.0
    %806 = vmatprep.subr.mxu0 0.0
    %807 = vmatpush1.msra.mxu0 0.0
    %808 = vmatprep.subr.mxu0 0.0
    %809 = vmatpush1.msra.mxu0 0.0
    %810 = vmatprep.subr.mxu0 0.0
    %811 = vmatpush1.msra.mxu0 0.0
    %812 = vmatprep.subr.mxu0 0.0
    %813 = vmatpush1.msra.mxu0 0.0
    %814 = vmatprep.subr.mxu0 0.0
    %815 = vmatpush1.msra.mxu0 0.0
    %816 = vmatprep.subr.mxu0 0.0
    %817 = vmatpush1.msra.mxu0 0.0
    %818 = vmatprep.subr.mxu0 0.0
    %819 = vmatpush1.msra.mxu0 0.0
    %820 = vmatprep.subr.mxu0 0.0
    %821 = vmatpush1.msra.mxu0 0.0
    %822 = vmatprep.subr.mxu0 0.0
    %823 = vmatpush1.msra.mxu0 0.0
    %824 = vmatprep.subr.mxu0 0.0
    %825 = vmatpush1.msra.mxu0 0.0
    %826 = vmatprep.subr.mxu0 0.0
    %827 = vmatpush1.msra.mxu0 0.0
    %828 = vmatprep.subr.mxu0 0.0
    %829 = vmatpush1.msra.mxu0 0.0
    %830 = vmatprep.subr.mxu0 0.0
    %831 = vmatpush1.msra.mxu0 0.0
    %832 = vmatprep.subr.mxu0 0.0
    %833 = vmatpush1.msra.mxu0 0.0
    %834 = vmatprep.subr.mxu0 0.0
    %835 = vmatpush1.msra.mxu0 0.0
    %836 = vmatprep.subr.mxu0 0.0
    %837 = vmatpush1.msra.mxu0 0.0
    %838 = vmatprep.subr.mxu0 0.0
    %839 = vmatpush1.msra.mxu0 0.0
    %840 = vmatprep.mubr.f32.mxu0 0.0
    %841 = vmatmul.mubr.f32.gmra.mrb[0].mxu0 %v774
    %v842 = vpop.f32.mrb[0].mxu0
    %v843 = vadd.f32 %v770, %v842
    %v844 = vpop.f32.mrb[0].mxu0
    %845 = vdwg.mxu0
    %846 = vrot.lane.b32.xlu0 %v188, 112
    %v847 = vpop.permute.xlu0 %846
    %848 = vrot.lane.b32.xlu0 %v274, 112
    %v849 = vpop.permute.xlu0 %848
    %v850 = vsel %vm373, %v847, 0
    %v852 = vsel %vm373, %v849, 0
    %854 = vmatprep.subr.mxu0 0.0
    %855 = vmatpush1.xpose.msra.mxu0 %v852
    %856 = vmatprep.subr.mxu0 0.0
    %857 = vmatpush1.xpose.msra.mxu0 0.0
    %858 = vmatprep.subr.mxu0 0.0
    %859 = vmatpush1.xpose.msra.mxu0 0.0
    %860 = vmatprep.subr.mxu0 0.0
    %861 = vmatpush1.xpose.msra.mxu0 0.0
    %862 = vmatprep.subr.mxu0 0.0
    %863 = vmatpush1.xpose.msra.mxu0 0.0
    %864 = vmatprep.subr.mxu0 0.0
    %865 = vmatpush1.xpose.msra.mxu0 0.0
    %866 = vmatprep.subr.mxu0 0.0
    %867 = vmatpush1.xpose.msra.mxu0 0.0
    %868 = vmatprep.subr.mxu0 0.0
    %869 = vmatpush1.xpose.msra.mxu0 0.0
    %870 = vmatprep.subr.mxu0 0.0
    %871 = vmatpush1.xpose.msra.mxu0 0.0
    %872 = vmatprep.subr.mxu0 0.0
    %873 = vmatpush1.xpose.msra.mxu0 0.0
    %874 = vmatprep.subr.mxu0 0.0
    %875 = vmatpush1.xpose.msra.mxu0 0.0
    %876 = vmatprep.subr.mxu0 0.0
    %877 = vmatpush1.xpose.msra.mxu0 0.0
    %878 = vmatprep.subr.mxu0 0.0
    %879 = vmatpush1.xpose.msra.mxu0 0.0
    %880 = vmatprep.subr.mxu0 0.0
    %881 = vmatpush1.xpose.msra.mxu0 0.0
    %882 = vmatprep.subr.mxu0 0.0
    %883 = vmatpush1.xpose.msra.mxu0 0.0
    %884 = vmatprep.subr.mxu0 0.0
    %885 = vmatpush1.xpose.msra.mxu0 0.0
    %886 = vmatprep.subr.mxu0 0.0
    %887 = vmatpush1.xpose.msra.mxu0 0.0
    %888 = vmatprep.subr.mxu0 0.0
    %889 = vmatpush1.xpose.msra.mxu0 0.0
    %890 = vmatprep.subr.mxu0 0.0
    %891 = vmatpush1.xpose.msra.mxu0 0.0
    %892 = vmatprep.subr.mxu0 0.0
    %893 = vmatpush1.xpose.msra.mxu0 0.0
    %894 = vmatprep.subr.mxu0 0.0
    %895 = vmatpush1.xpose.msra.mxu0 0.0
    %896 = vmatprep.subr.mxu0 0.0
    %897 = vmatpush1.xpose.msra.mxu0 0.0
    %898 = vmatprep.subr.mxu0 0.0
    %899 = vmatpush1.xpose.msra.mxu0 0.0
    %900 = vmatprep.subr.mxu0 0.0
    %901 = vmatpush1.xpose.msra.mxu0 0.0
    %902 = vmatprep.subr.mxu0 0.0
    %903 = vmatpush1.xpose.msra.mxu0 0.0
    %904 = vmatprep.subr.mxu0 0.0
    %905 = vmatpush1.xpose.msra.mxu0 0.0
    %906 = vmatprep.subr.mxu0 0.0
    %907 = vmatpush1.xpose.msra.mxu0 0.0
    %908 = vmatprep.subr.mxu0 0.0
    %909 = vmatpush1.xpose.msra.mxu0 0.0
    %910 = vmatprep.subr.mxu0 0.0
    %911 = vmatpush1.xpose.msra.mxu0 0.0
    %912 = vmatprep.subr.mxu0 0.0
    %913 = vmatpush1.xpose.msra.mxu0 0.0
    %914 = vmatprep.subr.mxu0 0.0
    %915 = vmatpush1.xpose.msra.mxu0 0.0
    %916 = vmatprep.subr.mxu0 0.0
    %917 = vmatpush1.xpose.msra.mxu0 0.0
    %918 = vmatprep.mubr.f32.mxu0 0.0
    %919 = vmatmul.mubr.f32.gmra.mrb[0].mxu0 %v850
    %v920 = vpop.f32.mrb[0].mxu0
    %v921 = vadd.f32 0.0, %v920
    %v922 = vpop.f32.mrb[0].mxu0
    %923 = vdwg.mxu0
    %v924 = vsel %vm373, %v921, -inf
    %925 = vmax.xlane.f32.xlu0 %v924
    %v926 = vpop.xlane.xlu0 %925
    %v927 = vsub.f32 %v921, %v926
    %v928 = vmul.f32 %v927, 1.442695
    %v929 = vpow.pop %v928
    %v930 = vsel %vm373, %v929, 0.0
    %931 = vadd.xlane.f32.xlu0 %v930
    %v932 = vpop.xlane.xlu0 %931
    %933 = vrot.lane.b32.xlu0 %v360, 112
    %v934 = vpop.permute.xlu0 %933
    %v937 = vsel %vm373, %v929, 0
    %939 = vmatprep.subr.mxu0 0.0
    %940 = vmatpush1.msra.mxu0 %v934
    %941 = vmatprep.subr.mxu0 0.0
    %942 = vmatpush1.msra.mxu0 0.0
    %943 = vmatprep.subr.mxu0 0.0
    %944 = vmatpush1.msra.mxu0 0.0
    %945 = vmatprep.subr.mxu0 0.0
    %946 = vmatpush1.msra.mxu0 0.0
    %947 = vmatprep.subr.mxu0 0.0
    %948 = vmatpush1.msra.mxu0 0.0
    %949 = vmatprep.subr.mxu0 0.0
    %950 = vmatpush1.msra.mxu0 0.0
    %951 = vmatprep.subr.mxu0 0.0
    %952 = vmatpush1.msra.mxu0 0.0
    %953 = vmatprep.subr.mxu0 0.0
    %954 = vmatpush1.msra.mxu0 0.0
    %955 = vmatprep.subr.mxu0 0.0
    %956 = vmatpush1.msra.mxu0 0.0
    %957 = vmatprep.subr.mxu0 0.0
    %958 = vmatpush1.msra.mxu0 0.0
    %959 = vmatprep.subr.mxu0 0.0
    %960 = vmatpush1.msra.mxu0 0.0
    %961 = vmatprep.subr.mxu0 0.0
    %962 = vmatpush1.msra.mxu0 0.0
    %963 = vmatprep.subr.mxu0 0.0
    %964 = vmatpush1.msra.mxu0 0.0
    %965 = vmatprep.subr.mxu0 0.0
    %966 = vmatpush1.msra.mxu0 0.0
    %967 = vmatprep.subr.mxu0 0.0
    %968 = vmatpush1.msra.mxu0 0.0
    %969 = vmatprep.subr.mxu0 0.0
    %970 = vmatpush1.msra.mxu0 0.0
    %971 = vmatprep.subr.mxu0 0.0
    %972 = vmatpush1.msra.mxu0 0.0
    %973 = vmatprep.subr.mxu0 0.0
    %974 = vmatpush1.msra.mxu0 0.0
    %975 = vmatprep.subr.mxu0 0.0
    %976 = vmatpush1.msra.mxu0 0.0
    %977 = vmatprep.subr.mxu0 0.0
    %978 = vmatpush1.msra.mxu0 0.0
    %979 = vmatprep.subr.mxu0 0.0
    %980 = vmatpush1.msra.mxu0 0.0
    %981 = vmatprep.subr.mxu0 0.0
    %982 = vmatpush1.msra.mxu0 0.0
    %983 = vmatprep.subr.mxu0 0.0
    %984 = vmatpush1.msra.mxu0 0.0
    %985 = vmatprep.subr.mxu0 0.0
    %986 = vmatpush1.msra.mxu0 0.0
    %987 = vmatprep.subr.mxu0 0.0
    %988 = vmatpush1.msra.mxu0 0.0
    %989 = vmatprep.subr.mxu0 0.0
    %990 = vmatpush1.msra.mxu0 0.0
    %991 = vmatprep.subr.mxu0 0.0
    %992 = vmatpush1.msra.mxu0 0.0
    %993 = vmatprep.subr.mxu0 0.0
    %994 = vmatpush1.msra.mxu0 0.0
    %995 = vmatprep.subr.mxu0 0.0
    %996 = vmatpush1.msra.mxu0 0.0
    %997 = vmatprep.subr.mxu0 0.0
    %998 = vmatpush1.msra.mxu0 0.0
    %999 = vmatprep.subr.mxu0 0.0
    %1000 = vmatpush1.msra.mxu0 0.0
    %1001 = vmatprep.subr.mxu0 0.0
    %1002 = vmatpush1.msra.mxu0 0.0
    %1003 = vmatprep.mubr.f32.mxu0 0.0
    %1004 = vmatmul.mubr.f32.gmra.mrb[0].mxu0 %v937
    %v1005 = vpop.f32.mrb[0].mxu0
    %v1006 = vadd.f32 0.0, %v1005
    %v1007 = vpop.f32.mrb[0].mxu0
    %1008 = vdwg.mxu0
    %v1009 = vrcp.pop %v932
    %v1010 = vmul.f32 %v1006, %v1009
    %v1012 = vsel %vm373, %v1010, 0
    %1014 = vmatprep.subr.mxu0 0.0
    %1015 = vmatpush1.msra.mxu0 %v370
    %1016 = vmatprep.subr.mxu0 0.0
    %1017 = vmatpush1.msra.mxu0 0.0
    %1018 = vmatprep.subr.mxu0 0.0
    %1019 = vmatpush1.msra.mxu0 0.0
    %1020 = vmatprep.subr.mxu0 0.0
    %1021 = vmatpush1.msra.mxu0 0.0
    %1022 = vmatprep.subr.mxu0 0.0
    %1023 = vmatpush1.msra.mxu0 0.0
    %1024 = vmatprep.subr.mxu0 0.0
    %1025 = vmatpush1.msra.mxu0 0.0
    %1026 = vmatprep.subr.mxu0 0.0
    %1027 = vmatpush1.msra.mxu0 0.0
    %1028 = vmatprep.subr.mxu0 0.0
    %1029 = vmatpush1.msra.mxu0 0.0
    %1030 = vmatprep.subr.mxu0 0.0
    %1031 = vmatpush1.msra.mxu0 0.0
    %1032 = vmatprep.subr.mxu0 0.0
    %1033 = vmatpush1.msra.mxu0 0.0
    %1034 = vmatprep.subr.mxu0 0.0
    %1035 = vmatpush1.msra.mxu0 0.0
    %1036 = vmatprep.subr.mxu0 0.0
    %1037 = vmatpush1.msra.mxu0 0.0
    %1038 = vmatprep.subr.mxu0 0.0
    %1039 = vmatpush1.msra.mxu0 0.0
    %1040 = vmatprep.subr.mxu0 0.0
    %1041 = vmatpush1.msra.mxu0 0.0
    %1042 = vmatprep.subr.mxu0 0.0
    %1043 = vmatpush1.msra.mxu0 0.0
    %1044 = vmatprep.subr.mxu0 0.0
    %1045 = vmatpush1.msra.mxu0 0.0
    %1046 = vmatprep.subr.mxu0 0.0
    %1047 = vmatpush1.msra.mxu0 0.0
    %1048 = vmatprep.subr.mxu0 0.0
    %1049 = vmatpush1.msra.mxu0 0.0
    %1050 = vmatprep.subr.mxu0 0.0
    %1051 = vmatpush1.msra.mxu0 0.0
    %1052 = vmatprep.subr.mxu0 0.0
    %1053 = vmatpush1.msra.mxu0 0.0
    %1054 = vmatprep.subr.mxu0 0.0
    %1055 = vmatpush1.msra.mxu0 0.0
    %1056 = vmatprep.subr.mxu0 0.0
    %1057 = vmatpush1.msra.mxu0 0.0
    %1058 = vmatprep.subr.mxu0 0.0
    %1059 = vmatpush1.msra.mxu0 0.0
    %1060 = vmatprep.subr.mxu0 0.0
    %1061 = vmatpush1.msra.mxu0 0.0
    %1062 = vmatprep.subr.mxu0 0.0
    %1063 = vmatpush1.msra.mxu0 0.0
    %1064 = vmatprep.subr.mxu0 0.0
    %1065 = vmatpush1.msra.mxu0 0.0
    %1066 = vmatprep.subr.mxu0 0.0
    %1067 = vmatpush1.msra.mxu0 0.0
    %1068 = vmatprep.subr.mxu0 0.0
    %1069 = vmatpush1.msra.mxu0 0.0
    %1070 = vmatprep.subr.mxu0 0.0
    %1071 = vmatpush1.msra.mxu0 0.0
    %1072 = vmatprep.subr.mxu0 0.0
    %1073 = vmatpush1.msra.mxu0 0.0
    %1074 = vmatprep.subr.mxu0 0.0
    %1075 = vmatpush1.msra.mxu0 0.0
    %1076 = vmatprep.subr.mxu0 0.0
    %1077 = vmatpush1.msra.mxu0 0.0
    %1078 = vmatprep.mubr.f32.mxu0 0.0
    %1079 = vmatmul.mubr.f32.gmra.mrb[0].mxu0 %v1012
    %v1080 = vpop.f32.mrb[0].mxu0
    %v1081 = vadd.f32 0.0, %v1080
    %v1082 = vpop.f32.mrb[0].mxu0
    %1083 = vdwg.mxu0
    %v1084 = vadd.f32 %v843, %v1081
    %1085 = vrot.lane.b32.xlu0 %v188, 104
    %v1086 = vpop.permute.xlu0 %1085
    %1087 = vrot.lane.b32.xlu0 %v274, 104
    %v1088 = vpop.permute.xlu0 %1087
    %v1089 = vsel %vm373, %v1086, 0
    %v1091 = vsel %vm373, %v1088, 0
    %1093 = vmatprep.subr.mxu0 0.0
    %1094 = vmatpush1.xpose.msra.mxu0 %v1091
    %1095 = vmatprep.subr.mxu0 0.0
    %1096 = vmatpush1.xpose.msra.mxu0 0.0
    %1097 = vmatprep.subr.mxu0 0.0
    %1098 = vmatpush1.xpose.msra.mxu0 0.0
    %1099 = vmatprep.subr.mxu0 0.0
    %1100 = vmatpush1.xpose.msra.mxu0 0.0
    %1101 = vmatprep.subr.mxu0 0.0
    %1102 = vmatpush1.xpose.msra.mxu0 0.0
    %1103 = vmatprep.subr.mxu0 0.0
    %1104 = vmatpush1.xpose.msra.mxu0 0.0
    %1105 = vmatprep.subr.mxu0 0.0
    %1106 = vmatpush1.xpose.msra.mxu0 0.0
    %1107 = vmatprep.subr.mxu0 0.0
    %1108 = vmatpush1.xpose.msra.mxu0 0.0
    %1109 = vmatprep.subr.mxu0 0.0
    %1110 = vmatpush1.xpose.msra.mxu0 0.0
    %1111 = vmatprep.subr.mxu0 0.0
    %1112 = vmatpush1.xpose.msra.mxu0 0.0
    %1113 = vmatprep.subr.mxu0 0.0
    %1114 = vmatpush1.xpose.msra.mxu0 0.0
    %1115 = vmatprep.subr.mxu0 0.0
    %1116 = vmatpush1.xpose.msra.mxu0 0.0
    %1117 = vmatprep.subr.mxu0 0.0
    %1118 = vmatpush1.xpose.msra.mxu0 0.0
    %1119 = vmatprep.subr.mxu0 0.0
    %1120 = vmatpush1.xpose.msra.mxu0 0.0
    %1121 = vmatprep.subr.mxu0 0.0
    %1122 = vmatpush1.xpose.msra.mxu0 0.0
    %1123 = vmatprep.subr.mxu0 0.0
    %1124 = vmatpush1.xpose.msra.mxu0 0.0
    %1125 = vmatprep.subr.mxu0 0.0
    %1126 = vmatpush1.xpose.msra.mxu0 0.0
    %1127 = vmatprep.subr.mxu0 0.0
    %1128 = vmatpush1.xpose.msra.mxu0 0.0
    %1129 = vmatprep.subr.mxu0 0.0
    %1130 = vmatpush1.xpose.msra.mxu0 0.0
    %1131 = vmatprep.subr.mxu0 0.0
    %1132 = vmatpush1.xpose.msra.mxu0 0.0
    %1133 = vmatprep.subr.mxu0 0.0
    %1134 = vmatpush1.xpose.msra.mxu0 0.0
    %1135 = vmatprep.subr.mxu0 0.0
    %1136 = vmatpush1.xpose.msra.mxu0 0.0
    %1137 = vmatprep.subr.mxu0 0.0
    %1138 = vmatpush1.xpose.msra.mxu0 0.0
    %1139 = vmatprep.subr.mxu0 0.0
    %1140 = vmatpush1.xpose.msra.mxu0 0.0
    %1141 = vmatprep.subr.mxu0 0.0
    %1142 = vmatpush1.xpose.msra.mxu0 0.0
    %1143 = vmatprep.subr.mxu0 0.0
    %1144 = vmatpush1.xpose.msra.mxu0 0.0
    %1145 = vmatprep.subr.mxu0 0.0
    %1146 = vmatpush1.xpose.msra.mxu0 0.0
    %1147 = vmatprep.subr.mxu0 0.0
    %1148 = vmatpush1.xpose.msra.mxu0 0.0
    %1149 = vmatprep.subr.mxu0 0.0
    %1150 = vmatpush1.xpose.msra.mxu0 0.0
    %1151 = vmatprep.subr.mxu0 0.0
    %1152 = vmatpush1.xpose.msra.mxu0 0.0
    %1153 = vmatprep.subr.mxu0 0.0
    %1154 = vmatpush1.xpose.msra.mxu0 0.0
    %1155 = vmatprep.subr.mxu0 0.0
    %1156 = vmatpush1.xpose.msra.mxu0 0.0
    %1157 = vmatprep.mubr.f32.mxu0 0.0
    %1158 = vmatmul.mubr.f32.gmra.mrb[0].mxu0 %v1089
    %v1159 = vpop.f32.mrb[0].mxu0
    %v1160 = vadd.f32 0.0, %v1159
    %v1161 = vpop.f32.mrb[0].mxu0
    %1162 = vdwg.mxu0
    %v1163 = vsel %vm373, %v1160, -inf
    %1164 = vmax.xlane.f32.xlu0 %v1163
    %v1165 = vpop.xlane.xlu0 %1164
    %v1166 = vsub.f32 %v1160, %v1165
    %v1167 = vmul.f32 %v1166, 1.442695
    %v1168 = vpow.pop %v1167
    %v1169 = vsel %vm373, %v1168, 0.0
    %1170 = vadd.xlane.f32.xlu0 %v1169
    %v1171 = vpop.xlane.xlu0 %1170
    %1172 = vrot.lane.b32.xlu0 %v360, 104
    %v1173 = vpop.permute.xlu0 %1172
    %v1176 = vsel %vm373, %v1168, 0
    %1178 = vmatprep.subr.mxu0 0.0
    %1179 = vmatpush1.msra.mxu0 %v1173
    %1180 = vmatprep.subr.mxu0 0.0
    %1181 = vmatpush1.msra.mxu0 0.0
    %1182 = vmatprep.subr.mxu0 0.0
    %1183 = vmatpush1.msra.mxu0 0.0
    %1184 = vmatprep.subr.mxu0 0.0
    %1185 = vmatpush1.msra.mxu0 0.0
    %1186 = vmatprep.subr.mxu0 0.0
    %1187 = vmatpush1.msra.mxu0 0.0
    %1188 = vmatprep.subr.mxu0 0.0
    %1189 = vmatpush1.msra.mxu0 0.0
    %1190 = vmatprep.subr.mxu0 0.0
    %1191 = vmatpush1.msra.mxu0 0.0
    %1192 = vmatprep.subr.mxu0 0.0
    %1193 = vmatpush1.msra.mxu0 0.0
    %1194 = vmatprep.subr.mxu0 0.0
    %1195 = vmatpush1.msra.mxu0 0.0
    %1196 = vmatprep.subr.mxu0 0.0
    %1197 = vmatpush1.msra.mxu0 0.0
    %1198 = vmatprep.subr.mxu0 0.0
    %1199 = vmatpush1.msra.mxu0 0.0
    %1200 = vmatprep.subr.mxu0 0.0
    %1201 = vmatpush1.msra.mxu0 0.0
    %1202 = vmatprep.subr.mxu0 0.0
    %1203 = vmatpush1.msra.mxu0 0.0
    %1204 = vmatprep.subr.mxu0 0.0
    %1205 = vmatpush1.msra.mxu0 0.0
    %1206 = vmatprep.subr.mxu0 0.0
    %1207 = vmatpush1.msra.mxu0 0.0
    %1208 = vmatprep.subr.mxu0 0.0
    %1209 = vmatpush1.msra.mxu0 0.0
    %1210 = vmatprep.subr.mxu0 0.0
    %1211 = vmatpush1.msra.mxu0 0.0
    %1212 = vmatprep.subr.mxu0 0.0
    %1213 = vmatpush1.msra.mxu0 0.0
    %1214 = vmatprep.subr.mxu0 0.0
    %1215 = vmatpush1.msra.mxu0 0.0
    %1216 = vmatprep.subr.mxu0 0.0
    %1217 = vmatpush1.msra.mxu0 0.0
    %1218 = vmatprep.subr.mxu0 0.0
    %1219 = vmatpush1.msra.mxu0 0.0
    %1220 = vmatprep.subr.mxu0 0.0
    %1221 = vmatpush1.msra.mxu0 0.0
    %1222 = vmatprep.subr.mxu0 0.0
    %1223 = vmatpush1.msra.mxu0 0.0
    %1224 = vmatprep.subr.mxu0 0.0
    %1225 = vmatpush1.msra.mxu0 0.0
    %1226 = vmatprep.subr.mxu0 0.0
    %1227 = vmatpush1.msra.mxu0 0.0
    %1228 = vmatprep.subr.mxu0 0.0
    %1229 = vmatpush1.msra.mxu0 0.0
    %1230 = vmatprep.subr.mxu0 0.0
    %1231 = vmatpush1.msra.mxu0 0.0
    %1232 = vmatprep.subr.mxu0 0.0
    %1233 = vmatpush1.msra.mxu0 0.0
    %1234 = vmatprep.subr.mxu0 0.0
    %1235 = vmatpush1.msra.mxu0 0.0
    %1236 = vmatprep.subr.mxu0 0.0
    %1237 = vmatpush1.msra.mxu0 0.0
    %1238 = vmatprep.subr.mxu0 0.0
    %1239 = vmatpush1.msra.mxu0 0.0
    %1240 = vmatprep.subr.mxu0 0.0
    %1241 = vmatpush1.msra.mxu0 0.0
    %1242 = vmatprep.mubr.f32.mxu0 0.0
    %1243 = vmatmul.mubr.f32.gmra.mrb[0].mxu0 %v1176
    %v1244 = vpop.f32.mrb[0].mxu0
    %v1245 = vadd.f32 0.0, %v1244
    %v1246 = vpop.f32.mrb[0].mxu0
    %1247 = vdwg.mxu0
    %v1248 = vrcp.pop %v1171
    %v1249 = vmul.f32 %v1245, %v1248
    %v1251 = vsel %vm373, %v1249, 0
    %1253 = vmatprep.subr.mxu0 0.0
    %1254 = vmatpush1.msra.mxu0 %v371
    %1255 = vmatprep.subr.mxu0 0.0
    %1256 = vmatpush1.msra.mxu0 0.0
    %1257 = vmatprep.subr.mxu0 0.0
    %1258 = vmatpush1.msra.mxu0 0.0
    %1259 = vmatprep.subr.mxu0 0.0
    %1260 = vmatpush1.msra.mxu0 0.0
    %1261 = vmatprep.subr.mxu0 0.0
    %1262 = vmatpush1.msra.mxu0 0.0
    %1263 = vmatprep.subr.mxu0 0.0
    %1264 = vmatpush1.msra.mxu0 0.0
    %1265 = vmatprep.subr.mxu0 0.0
    %1266 = vmatpush1.msra.mxu0 0.0
    %1267 = vmatprep.subr.mxu0 0.0
    %1268 = vmatpush1.msra.mxu0 0.0
    %1269 = vmatprep.subr.mxu0 0.0
    %1270 = vmatpush1.msra.mxu0 0.0
    %1271 = vmatprep.subr.mxu0 0.0
    %1272 = vmatpush1.msra.mxu0 0.0
    %1273 = vmatprep.subr.mxu0 0.0
    %1274 = vmatpush1.msra.mxu0 0.0
    %1275 = vmatprep.subr.mxu0 0.0
    %1276 = vmatpush1.msra.mxu0 0.0
    %1277 = vmatprep.subr.mxu0 0.0
    %1278 = vmatpush1.msra.mxu0 0.0
    %1279 = vmatprep.subr.mxu0 0.0
    %1280 = vmatpush1.msra.mxu0 0.0
    %1281 = vmatprep.subr.mxu0 0.0
    %1282 = vmatpush1.msra.mxu0 0.0
    %1283 = vmatprep.subr.mxu0 0.0
    %1284 = vmatpush1.msra.mxu0 0.0
    %1285 = vmatprep.subr.mxu0 0.0
    %1286 = vmatpush1.msra.mxu0 0.0
    %1287 = vmatprep.subr.mxu0 0.0
    %1288 = vmatpush1.msra.mxu0 0.0
    %1289 = vmatprep.subr.mxu0 0.0
    %1290 = vmatpush1.msra.mxu0 0.0
    %1291 = vmatprep.subr.mxu0 0.0
    %1292 = vmatpush1.msra.mxu0 0.0
    %1293 = vmatprep.subr.mxu0 0.0
    %1294 = vmatpush1.msra.mxu0 0.0
    %1295 = vmatprep.subr.mxu0 0.0
    %1296 = vmatpush1.msra.mxu0 0.0
    %1297 = vmatprep.subr.mxu0 0.0
    %1298 = vmatpush1.msra.mxu0 0.0
    %1299 = vmatprep.subr.mxu0 0.0
    %1300 = vmatpush1.msra.mxu0 0.0
    %1301 = vmatprep.subr.mxu0 0.0
    %1302 = vmatpush1.msra.mxu0 0.0
    %1303 = vmatprep.subr.mxu0 0.0
    %1304 = vmatpush1.msra.mxu0 0.0
    %1305 = vmatprep.subr.mxu0 0.0
    %1306 = vmatpush1.msra.mxu0 0.0
    %1307 = vmatprep.subr.mxu0 0.0
    %1308 = vmatpush1.msra.mxu0 0.0
    %1309 = vmatprep.subr.mxu0 0.0
    %1310 = vmatpush1.msra.mxu0 0.0
    %1311 = vmatprep.subr.mxu0 0.0
    %1312 = vmatpush1.msra.mxu0 0.0
    %1313 = vmatprep.subr.mxu0 0.0
    %1314 = vmatpush1.msra.mxu0 0.0
    %1315 = vmatprep.subr.mxu0 0.0
    %1316 = vmatpush1.msra.mxu0 0.0
    %1317 = vmatprep.mubr.f32.mxu0 0.0
    %1318 = vmatmul.mubr.f32.gmra.mrb[0].mxu0 %v1251
    %v1319 = vpop.f32.mrb[0].mxu0
    %v1320 = vadd.f32 0.0, %v1319
    %v1321 = vpop.f32.mrb[0].mxu0
    %1322 = vdwg.mxu0
    %v1323 = vadd.f32 %v1084, %v1320
    %v1325 = vlaneseq
    %v1326 = vshrl.u32 %v1325, 7
    %v1327 = vsub.s32 0, %v1326
    %v1328 = vrot.slane %v372, %v1327
    %v1330 = vadd.f32 %v1323, %v1328
    %1331 = vst.msk [vmem:[#allocation11] sm:$0xff] %vm114, %v1330
    %v1333 = vsel %vm373, %v193, 0
    %v1336 = vsel %vm373, %v279, 0
    %1338 = vmatprep.subr.mxu0 0.0
    %1339 = vmatpush1.xpose.msra.mxu0 %v1336
    %1340 = vmatprep.subr.mxu0 0.0
    %1341 = vmatpush1.xpose.msra.mxu0 0.0
    %1342 = vmatprep.subr.mxu0 0.0
    %1343 = vmatpush1.xpose.msra.mxu0 0.0
    %1344 = vmatprep.subr.mxu0 0.0
    %1345 = vmatpush1.xpose.msra.mxu0 0.0
    %1346 = vmatprep.subr.mxu0 0.0
    %1347 = vmatpush1.xpose.msra.mxu0 0.0
    %1348 = vmatprep.subr.mxu0 0.0
    %1349 = vmatpush1.xpose.msra.mxu0 0.0
    %1350 = vmatprep.subr.mxu0 0.0
    %1351 = vmatpush1.xpose.msra.mxu0 0.0
    %1352 = vmatprep.subr.mxu0 0.0
    %1353 = vmatpush1.xpose.msra.mxu0 0.0
    %1354 = vmatprep.subr.mxu0 0.0
    %1355 = vmatpush1.xpose.msra.mxu0 0.0
    %1356 = vmatprep.subr.mxu0 0.0
    %1357 = vmatpush1.xpose.msra.mxu0 0.0
    %1358 = vmatprep.subr.mxu0 0.0
    %1359 = vmatpush1.xpose.msra.mxu0 0.0
    %1360 = vmatprep.subr.mxu0 0.0
    %1361 = vmatpush1.xpose.msra.mxu0 0.0
    %1362 = vmatprep.subr.mxu0 0.0
    %1363 = vmatpush1.xpose.msra.mxu0 0.0
    %1364 = vmatprep.subr.mxu0 0.0
    %1365 = vmatpush1.xpose.msra.mxu0 0.0
    %1366 = vmatprep.subr.mxu0 0.0
    %1367 = vmatpush1.xpose.msra.mxu0 0.0
    %1368 = vmatprep.subr.mxu0 0.0
    %1369 = vmatpush1.xpose.msra.mxu0 0.0
    %1370 = vmatprep.subr.mxu0 0.0
    %1371 = vmatpush1.xpose.msra.mxu0 0.0
    %1372 = vmatprep.subr.mxu0 0.0
    %1373 = vmatpush1.xpose.msra.mxu0 0.0
    %1374 = vmatprep.subr.mxu0 0.0
    %1375 = vmatpush1.xpose.msra.mxu0 0.0
    %1376 = vmatprep.subr.mxu0 0.0
    %1377 = vmatpush1.xpose.msra.mxu0 0.0
    %1378 = vmatprep.subr.mxu0 0.0
    %1379 = vmatpush1.xpose.msra.mxu0 0.0
    %1380 = vmatprep.subr.mxu0 0.0
    %1381 = vmatpush1.xpose.msra.mxu0 0.0
    %1382 = vmatprep.subr.mxu0 0.0
    %1383 = vmatpush1.xpose.msra.mxu0 0.0
    %1384 = vmatprep.subr.mxu0 0.0
    %1385 = vmatpush1.xpose.msra.mxu0 0.0
    %1386 = vmatprep.subr.mxu0 0.0
    %1387 = vmatpush1.xpose.msra.mxu0 0.0
    %1388 = vmatprep.subr.mxu0 0.0
    %1389 = vmatpush1.xpose.msra.mxu0 0.0
    %1390 = vmatprep.subr.mxu0 0.0
    %1391 = vmatpush1.xpose.msra.mxu0 0.0
    %1392 = vmatprep.subr.mxu0 0.0
    %1393 = vmatpush1.xpose.msra.mxu0 0.0
    %1394 = vmatprep.subr.mxu0 0.0
    %1395 = vmatpush1.xpose.msra.mxu0 0.0
    %1396 = vmatprep.subr.mxu0 0.0
    %1397 = vmatpush1.xpose.msra.mxu0 0.0
    %1398 = vmatprep.subr.mxu0 0.0
    %1399 = vmatpush1.xpose.msra.mxu0 0.0
    %1400 = vmatprep.subr.mxu0 0.0
    %1401 = vmatpush1.xpose.msra.mxu0 0.0
    %1402 = vmatprep.mubr.f32.mxu0 0.0
    %1403 = vmatmul.mubr.f32.gmra.mrb[0].mxu0 %v1333
    %v1404 = vpop.f32.mrb[0].mxu0
    %v1405 = vadd.f32 0.0, %v1404
    %v1406 = vpop.f32.mrb[0].mxu0
    %1407 = vdwg.mxu0
    %v1408 = vsel %vm373, %v1405, -inf
    %1409 = vmax.xlane.f32.xlu0 %v1408
    %v1410 = vpop.xlane.xlu0 %1409
    %v1411 = vsub.f32 %v1405, %v1410
    %v1412 = vmul.f32 %v1411, 1.442695
    %v1413 = vpow.pop %v1412
    %v1414 = vsel %vm373, %v1413, 0.0
    %1415 = vadd.xlane.f32.xlu0 %v1414
    %v1416 = vpop.xlane.xlu0 %1415
    %v1418 = vsel %vm373, %v1413, 0
    %1420 = vmatprep.subr.mxu0 0.0
    %1421 = vmatpush1.msra.mxu0 %v365
    %1422 = vmatprep.subr.mxu0 0.0
    %1423 = vmatpush1.msra.mxu0 0.0
    %1424 = vmatprep.subr.mxu0 0.0
    %1425 = vmatpush1.msra.mxu0 0.0
    %1426 = vmatprep.subr.mxu0 0.0
    %1427 = vmatpush1.msra.mxu0 0.0
    %1428 = vmatprep.subr.mxu0 0.0
    %1429 = vmatpush1.msra.mxu0 0.0
    %1430 = vmatprep.subr.mxu0 0.0
    %1431 = vmatpush1.msra.mxu0 0.0
    %1432 = vmatprep.subr.mxu0 0.0
    %1433 = vmatpush1.msra.mxu0 0.0
    %1434 = vmatprep.subr.mxu0 0.0
    %1435 = vmatpush1.msra.mxu0 0.0
    %1436 = vmatprep.subr.mxu0 0.0
    %1437 = vmatpush1.msra.mxu0 0.0
    %1438 = vmatprep.subr.mxu0 0.0
    %1439 = vmatpush1.msra.mxu0 0.0
    %1440 = vmatprep.subr.mxu0 0.0
    %1441 = vmatpush1.msra.mxu0 0.0
    %1442 = vmatprep.subr.mxu0 0.0
    %1443 = vmatpush1.msra.mxu0 0.0
    %1444 = vmatprep.subr.mxu0 0.0
    %1445 = vmatpush1.msra.mxu0 0.0
    %1446 = vmatprep.subr.mxu0 0.0
    %1447 = vmatpush1.msra.mxu0 0.0
    %1448 = vmatprep.subr.mxu0 0.0
    %1449 = vmatpush1.msra.mxu0 0.0
    %1450 = vmatprep.subr.mxu0 0.0
    %1451 = vmatpush1.msra.mxu0 0.0
    %1452 = vmatprep.subr.mxu0 0.0
    %1453 = vmatpush1.msra.mxu0 0.0
    %1454 = vmatprep.subr.mxu0 0.0
    %1455 = vmatpush1.msra.mxu0 0.0
    %1456 = vmatprep.subr.mxu0 0.0
    %1457 = vmatpush1.msra.mxu0 0.0
    %1458 = vmatprep.subr.mxu0 0.0
    %1459 = vmatpush1.msra.mxu0 0.0
    %1460 = vmatprep.subr.mxu0 0.0
    %1461 = vmatpush1.msra.mxu0 0.0
    %1462 = vmatprep.subr.mxu0 0.0
    %1463 = vmatpush1.msra.mxu0 0.0
    %1464 = vmatprep.subr.mxu0 0.0
    %1465 = vmatpush1.msra.mxu0 0.0
    %1466 = vmatprep.subr.mxu0 0.0
    %1467 = vmatpush1.msra.mxu0 0.0
    %1468 = vmatprep.subr.mxu0 0.0
    %1469 = vmatpush1.msra.mxu0 0.0
    %1470 = vmatprep.subr.mxu0 0.0
    %1471 = vmatpush1.msra.mxu0 0.0
    %1472 = vmatprep.subr.mxu0 0.0
    %1473 = vmatpush1.msra.mxu0 0.0
    %1474 = vmatprep.subr.mxu0 0.0
    %1475 = vmatpush1.msra.mxu0 0.0
    %1476 = vmatprep.subr.mxu0 0.0
    %1477 = vmatpush1.msra.mxu0 0.0
    %1478 = vmatprep.subr.mxu0 0.0
    %1479 = vmatpush1.msra.mxu0 0.0
    %1480 = vmatprep.subr.mxu0 0.0
    %1481 = vmatpush1.msra.mxu0 0.0
    %1482 = vmatprep.subr.mxu0 0.0
    %1483 = vmatpush1.msra.mxu0 0.0
    %1484 = vmatprep.mubr.f32.mxu0 0.0
    %1485 = vmatmul.mubr.f32.gmra.mrb[0].mxu0 %v1418
    %v1486 = vpop.f32.mrb[0].mxu0
    %v1487 = vadd.f32 0.0, %v1486
    %v1488 = vpop.f32.mrb[0].mxu0
    %1489 = vdwg.mxu0
    %v1490 = vrcp.pop %v1416
    %v1491 = vmul.f32 %v1487, %v1490
    %1492 = vrot.lane.b32.xlu0 %v193, 120
    %v1493 = vpop.permute.xlu0 %1492
    %1494 = vrot.lane.b32.xlu0 %v279, 120
    %v1495 = vpop.permute.xlu0 %1494
    %v1496 = vsel %vm373, %v1493, 0
    %v1498 = vsel %vm373, %v1495, 0
    %1500 = vmatprep.subr.mxu0 0.0
    %1501 = vmatpush1.xpose.msra.mxu0 %v1498
    %1502 = vmatprep.subr.mxu0 0.0
    %1503 = vmatpush1.xpose.msra.mxu0 0.0
    %1504 = vmatprep.subr.mxu0 0.0
    %1505 = vmatpush1.xpose.msra.mxu0 0.0
    %1506 = vmatprep.subr.mxu0 0.0
    %1507 = vmatpush1.xpose.msra.mxu0 0.0
    %1508 = vmatprep.subr.mxu0 0.0
    %1509 = vmatpush1.xpose.msra.mxu0 0.0
    %1510 = vmatprep.subr.mxu0 0.0
    %1511 = vmatpush1.xpose.msra.mxu0 0.0
    %1512 = vmatprep.subr.mxu0 0.0
    %1513 = vmatpush1.xpose.msra.mxu0 0.0
    %1514 = vmatprep.subr.mxu0 0.0
    %1515 = vmatpush1.xpose.msra.mxu0 0.0
    %1516 = vmatprep.subr.mxu0 0.0
    %1517 = vmatpush1.xpose.msra.mxu0 0.0
    %1518 = vmatprep.subr.mxu0 0.0
    %1519 = vmatpush1.xpose.msra.mxu0 0.0
    %1520 = vmatprep.subr.mxu0 0.0
    %1521 = vmatpush1.xpose.msra.mxu0 0.0
    %1522 = vmatprep.subr.mxu0 0.0
    %1523 = vmatpush1.xpose.msra.mxu0 0.0
    %1524 = vmatprep.subr.mxu0 0.0
    %1525 = vmatpush1.xpose.msra.mxu0 0.0
    %1526 = vmatprep.subr.mxu0 0.0
    %1527 = vmatpush1.xpose.msra.mxu0 0.0
    %1528 = vmatprep.subr.mxu0 0.0
    %1529 = vmatpush1.xpose.msra.mxu0 0.0
    %1530 = vmatprep.subr.mxu0 0.0
    %1531 = vmatpush1.xpose.msra.mxu0 0.0
    %1532 = vmatprep.subr.mxu0 0.0
    %1533 = vmatpush1.xpose.msra.mxu0 0.0
    %1534 = vmatprep.subr.mxu0 0.0
    %1535 = vmatpush1.xpose.msra.mxu0 0.0
    %1536 = vmatprep.subr.mxu0 0.0
    %1537 = vmatpush1.xpose.msra.mxu0 0.0
    %1538 = vmatprep.subr.mxu0 0.0
    %1539 = vmatpush1.xpose.msra.mxu0 0.0
    %1540 = vmatprep.subr.mxu0 0.0
    %1541 = vmatpush1.xpose.msra.mxu0 0.0
    %1542 = vmatprep.subr.mxu0 0.0
    %1543 = vmatpush1.xpose.msra.mxu0 0.0
    %1544 = vmatprep.subr.mxu0 0.0
    %1545 = vmatpush1.xpose.msra.mxu0 0.0
    %1546 = vmatprep.subr.mxu0 0.0
    %1547 = vmatpush1.xpose.msra.mxu0 0.0
    %1548 = vmatprep.subr.mxu0 0.0
    %1549 = vmatpush1.xpose.msra.mxu0 0.0
    %1550 = vmatprep.subr.mxu0 0.0
    %1551 = vmatpush1.xpose.msra.mxu0 0.0
    %1552 = vmatprep.subr.mxu0 0.0
    %1553 = vmatpush1.xpose.msra.mxu0 0.0
    %1554 = vmatprep.subr.mxu0 0.0
    %1555 = vmatpush1.xpose.msra.mxu0 0.0
    %1556 = vmatprep.subr.mxu0 0.0
    %1557 = vmatpush1.xpose.msra.mxu0 0.0
    %1558 = vmatprep.subr.mxu0 0.0
    %1559 = vmatpush1.xpose.msra.mxu0 0.0
    %1560 = vmatprep.subr.mxu0 0.0
    %1561 = vmatpush1.xpose.msra.mxu0 0.0
    %1562 = vmatprep.subr.mxu0 0.0
    %1563 = vmatpush1.xpose.msra.mxu0 0.0
    %1564 = vmatprep.mubr.f32.mxu0 0.0
    %1565 = vmatmul.mubr.f32.gmra.mrb[0].mxu0 %v1496
    %v1566 = vpop.f32.mrb[0].mxu0
    %v1567 = vadd.f32 0.0, %v1566
    %v1568 = vpop.f32.mrb[0].mxu0
    %1569 = vdwg.mxu0
    %v1570 = vsel %vm373, %v1567, -inf
    %1571 = vmax.xlane.f32.xlu0 %v1570
    %v1572 = vpop.xlane.xlu0 %1571
    %v1573 = vsub.f32 %v1567, %v1572
    %v1574 = vmul.f32 %v1573, 1.442695
    %v1575 = vpow.pop %v1574
    %v1576 = vsel %vm373, %v1575, 0.0
    %1577 = vadd.xlane.f32.xlu0 %v1576
    %v1578 = vpop.xlane.xlu0 %1577
    %1580 = vrot.lane.b32.xlu0 %v365, 120
    %v1581 = vpop.permute.xlu0 %1580
    %v1584 = vsel %vm373, %v1575, 0
    %1586 = vmatprep.subr.mxu0 0.0
    %1587 = vmatpush1.msra.mxu0 %v1581
    %1588 = vmatprep.subr.mxu0 0.0
    %1589 = vmatpush1.msra.mxu0 0.0
    %1590 = vmatprep.subr.mxu0 0.0
    %1591 = vmatpush1.msra.mxu0 0.0
    %1592 = vmatprep.subr.mxu0 0.0
    %1593 = vmatpush1.msra.mxu0 0.0
    %1594 = vmatprep.subr.mxu0 0.0
    %1595 = vmatpush1.msra.mxu0 0.0
    %1596 = vmatprep.subr.mxu0 0.0
    %1597 = vmatpush1.msra.mxu0 0.0
    %1598 = vmatprep.subr.mxu0 0.0
    %1599 = vmatpush1.msra.mxu0 0.0
    %1600 = vmatprep.subr.mxu0 0.0
    %1601 = vmatpush1.msra.mxu0 0.0
    %1602 = vmatprep.subr.mxu0 0.0
    %1603 = vmatpush1.msra.mxu0 0.0
    %1604 = vmatprep.subr.mxu0 0.0
    %1605 = vmatpush1.msra.mxu0 0.0
    %1606 = vmatprep.subr.mxu0 0.0
    %1607 = vmatpush1.msra.mxu0 0.0
    %1608 = vmatprep.subr.mxu0 0.0
    %1609 = vmatpush1.msra.mxu0 0.0
    %1610 = vmatprep.subr.mxu0 0.0
    %1611 = vmatpush1.msra.mxu0 0.0
    %1612 = vmatprep.subr.mxu0 0.0
    %1613 = vmatpush1.msra.mxu0 0.0
    %1614 = vmatprep.subr.mxu0 0.0
    %1615 = vmatpush1.msra.mxu0 0.0
    %1616 = vmatprep.subr.mxu0 0.0
    %1617 = vmatpush1.msra.mxu0 0.0
    %1618 = vmatprep.subr.mxu0 0.0
    %1619 = vmatpush1.msra.mxu0 0.0
    %1620 = vmatprep.subr.mxu0 0.0
    %1621 = vmatpush1.msra.mxu0 0.0
    %1622 = vmatprep.subr.mxu0 0.0
    %1623 = vmatpush1.msra.mxu0 0.0
    %1624 = vmatprep.subr.mxu0 0.0
    %1625 = vmatpush1.msra.mxu0 0.0
    %1626 = vmatprep.subr.mxu0 0.0
    %1627 = vmatpush1.msra.mxu0 0.0
    %1628 = vmatprep.subr.mxu0 0.0
    %1629 = vmatpush1.msra.mxu0 0.0
    %1630 = vmatprep.subr.mxu0 0.0
    %1631 = vmatpush1.msra.mxu0 0.0
    %1632 = vmatprep.subr.mxu0 0.0
    %1633 = vmatpush1.msra.mxu0 0.0
    %1634 = vmatprep.subr.mxu0 0.0
    %1635 = vmatpush1.msra.mxu0 0.0
    %1636 = vmatprep.subr.mxu0 0.0
    %1637 = vmatpush1.msra.mxu0 0.0
    %1638 = vmatprep.subr.mxu0 0.0
    %1639 = vmatpush1.msra.mxu0 0.0
    %1640 = vmatprep.subr.mxu0 0.0
    %1641 = vmatpush1.msra.mxu0 0.0
    %1642 = vmatprep.subr.mxu0 0.0
    %1643 = vmatpush1.msra.mxu0 0.0
    %1644 = vmatprep.subr.mxu0 0.0
    %1645 = vmatpush1.msra.mxu0 0.0
    %1646 = vmatprep.subr.mxu0 0.0
    %1647 = vmatpush1.msra.mxu0 0.0
    %1648 = vmatprep.subr.mxu0 0.0
    %1649 = vmatpush1.msra.mxu0 0.0
    %1650 = vmatprep.mubr.f32.mxu0 0.0
    %1651 = vmatmul.mubr.f32.gmra.mrb[0].mxu0 %v1584
    %v1652 = vpop.f32.mrb[0].mxu0
    %v1653 = vadd.f32 0.0, %v1652
    %v1654 = vpop.f32.mrb[0].mxu0
    %1655 = vdwg.mxu0
    %v1656 = vrcp.pop %v1578
    %v1657 = vmul.f32 %v1653, %v1656
    %v1659 = vsel %vm373, %v1657, 0
    %1661 = vmatprep.subr.mxu0 0.0
    %1662 = vmatpush1.msra.mxu0 %v369
    %1663 = vmatprep.subr.mxu0 0.0
    %1664 = vmatpush1.msra.mxu0 0.0
    %1665 = vmatprep.subr.mxu0 0.0
    %1666 = vmatpush1.msra.mxu0 0.0
    %1667 = vmatprep.subr.mxu0 0.0
    %1668 = vmatpush1.msra.mxu0 0.0
    %1669 = vmatprep.subr.mxu0 0.0
    %1670 = vmatpush1.msra.mxu0 0.0
    %1671 = vmatprep.subr.mxu0 0.0
    %1672 = vmatpush1.msra.mxu0 0.0
    %1673 = vmatprep.subr.mxu0 0.0
    %1674 = vmatpush1.msra.mxu0 0.0
    %1675 = vmatprep.subr.mxu0 0.0
    %1676 = vmatpush1.msra.mxu0 0.0
    %1677 = vmatprep.subr.mxu0 0.0
    %1678 = vmatpush1.msra.mxu0 0.0
    %1679 = vmatprep.subr.mxu0 0.0
    %1680 = vmatpush1.msra.mxu0 0.0
    %1681 = vmatprep.subr.mxu0 0.0
    %1682 = vmatpush1.msra.mxu0 0.0
    %1683 = vmatprep.subr.mxu0 0.0
    %1684 = vmatpush1.msra.mxu0 0.0
    %1685 = vmatprep.subr.mxu0 0.0
    %1686 = vmatpush1.msra.mxu0 0.0
    %1687 = vmatprep.subr.mxu0 0.0
    %1688 = vmatpush1.msra.mxu0 0.0
    %1689 = vmatprep.subr.mxu0 0.0
    %1690 = vmatpush1.msra.mxu0 0.0
    %1691 = vmatprep.subr.mxu0 0.0
    %1692 = vmatpush1.msra.mxu0 0.0
    %1693 = vmatprep.subr.mxu0 0.0
    %1694 = vmatpush1.msra.mxu0 0.0
    %1695 = vmatprep.subr.mxu0 0.0
    %1696 = vmatpush1.msra.mxu0 0.0
    %1697 = vmatprep.subr.mxu0 0.0
    %1698 = vmatpush1.msra.mxu0 0.0
    %1699 = vmatprep.subr.mxu0 0.0
    %1700 = vmatpush1.msra.mxu0 0.0
    %1701 = vmatprep.subr.mxu0 0.0
    %1702 = vmatpush1.msra.mxu0 0.0
    %1703 = vmatprep.subr.mxu0 0.0
    %1704 = vmatpush1.msra.mxu0 0.0
    %1705 = vmatprep.subr.mxu0 0.0
    %1706 = vmatpush1.msra.mxu0 0.0
    %1707 = vmatprep.subr.mxu0 0.0
    %1708 = vmatpush1.msra.mxu0 0.0
    %1709 = vmatprep.subr.mxu0 0.0
    %1710 = vmatpush1.msra.mxu0 0.0
    %1711 = vmatprep.subr.mxu0 0.0
    %1712 = vmatpush1.msra.mxu0 0.0
    %1713 = vmatprep.subr.mxu0 0.0
    %1714 = vmatpush1.msra.mxu0 0.0
    %1715 = vmatprep.subr.mxu0 0.0
    %1716 = vmatpush1.msra.mxu0 0.0
    %1717 = vmatprep.subr.mxu0 0.0
    %1718 = vmatpush1.msra.mxu0 0.0
    %1719 = vmatprep.subr.mxu0 0.0
    %1720 = vmatpush1.msra.mxu0 0.0
    %1721 = vmatprep.subr.mxu0 0.0
    %1722 = vmatpush1.msra.mxu0 0.0
    %1723 = vmatprep.subr.mxu0 0.0
    %1724 = vmatpush1.msra.mxu0 0.0
    %1725 = vmatprep.mubr.f32.mxu0 0.0
    %1726 = vmatmul.mubr.f32.gmra.mrb[0].mxu0 %v1659
    %v1727 = vpop.f32.mrb[0].mxu0
    %v1728 = vadd.f32 0.0, %v1727
    %v1729 = vpop.f32.mrb[0].mxu0
    %1730 = vdwg.mxu0
    %v1732 = vsel %vm373, %v1491, 0
    %1734 = vmatprep.subr.mxu0 0.0
    %1735 = vmatpush1.msra.mxu0 %v368
    %1736 = vmatprep.subr.mxu0 0.0
    %1737 = vmatpush1.msra.mxu0 0.0
    %1738 = vmatprep.subr.mxu0 0.0
    %1739 = vmatpush1.msra.mxu0 0.0
    %1740 = vmatprep.subr.mxu0 0.0
    %1741 = vmatpush1.msra.mxu0 0.0
    %1742 = vmatprep.subr.mxu0 0.0
    %1743 = vmatpush1.msra.mxu0 0.0
    %1744 = vmatprep.subr.mxu0 0.0
    %1745 = vmatpush1.msra.mxu0 0.0
    %1746 = vmatprep.subr.mxu0 0.0
    %1747 = vmatpush1.msra.mxu0 0.0
    %1748 = vmatprep.subr.mxu0 0.0
    %1749 = vmatpush1.msra.mxu0 0.0
    %1750 = vmatprep.subr.mxu0 0.0
    %1751 = vmatpush1.msra.mxu0 0.0
    %1752 = vmatprep.subr.mxu0 0.0
    %1753 = vmatpush1.msra.mxu0 0.0
    %1754 = vmatprep.subr.mxu0 0.0
    %1755 = vmatpush1.msra.mxu0 0.0
    %1756 = vmatprep.subr.mxu0 0.0
    %1757 = vmatpush1.msra.mxu0 0.0
    %1758 = vmatprep.subr.mxu0 0.0
    %1759 = vmatpush1.msra.mxu0 0.0
    %1760 = vmatprep.subr.mxu0 0.0
    %1761 = vmatpush1.msra.mxu0 0.0
    %1762 = vmatprep.subr.mxu0 0.0
    %1763 = vmatpush1.msra.mxu0 0.0
    %1764 = vmatprep.subr.mxu0 0.0
    %1765 = vmatpush1.msra.mxu0 0.0
    %1766 = vmatprep.subr.mxu0 0.0
    %1767 = vmatpush1.msra.mxu0 0.0
    %1768 = vmatprep.subr.mxu0 0.0
    %1769 = vmatpush1.msra.mxu0 0.0
    %1770 = vmatprep.subr.mxu0 0.0
    %1771 = vmatpush1.msra.mxu0 0.0
    %1772 = vmatprep.subr.mxu0 0.0
    %1773 = vmatpush1.msra.mxu0 0.0
    %1774 = vmatprep.subr.mxu0 0.0
    %1775 = vmatpush1.msra.mxu0 0.0
    %1776 = vmatprep.subr.mxu0 0.0
    %1777 = vmatpush1.msra.mxu0 0.0
    %1778 = vmatprep.subr.mxu0 0.0
    %1779 = vmatpush1.msra.mxu0 0.0
    %1780 = vmatprep.subr.mxu0 0.0
    %1781 = vmatpush1.msra.mxu0 0.0
    %1782 = vmatprep.subr.mxu0 0.0
    %1783 = vmatpush1.msra.mxu0 0.0
    %1784 = vmatprep.subr.mxu0 0.0
    %1785 = vmatpush1.msra.mxu0 0.0
    %1786 = vmatprep.subr.mxu0 0.0
    %1787 = vmatpush1.msra.mxu0 0.0
    %1788 = vmatprep.subr.mxu0 0.0
    %1789 = vmatpush1.msra.mxu0 0.0
    %1790 = vmatprep.subr.mxu0 0.0
    %1791 = vmatpush1.msra.mxu0 0.0
    %1792 = vmatprep.subr.mxu0 0.0
    %1793 = vmatpush1.msra.mxu0 0.0
    %1794 = vmatprep.subr.mxu0 0.0
    %1795 = vmatpush1.msra.mxu0 0.0
    %1796 = vmatprep.subr.mxu0 0.0
    %1797 = vmatpush1.msra.mxu0 0.0
    %1798 = vmatprep.mubr.f32.mxu0 0.0
    %1799 = vmatmul.mubr.f32.gmra.mrb[0].mxu0 %v1732
    %v1800 = vpop.f32.mrb[0].mxu0
    %v1801 = vadd.f32 %v1728, %v1800
    %v1802 = vpop.f32.mrb[0].mxu0
    %1803 = vdwg.mxu0
    %1804 = vrot.lane.b32.xlu0 %v193, 112
    %v1805 = vpop.permute.xlu0 %1804
    %1806 = vrot.lane.b32.xlu0 %v279, 112
    %v1807 = vpop.permute.xlu0 %1806
    %v1808 = vsel %vm373, %v1805, 0
    %v1810 = vsel %vm373, %v1807, 0
    %1812 = vmatprep.subr.mxu0 0.0
    %1813 = vmatpush1.xpose.msra.mxu0 %v1810
    %1814 = vmatprep.subr.mxu0 0.0
    %1815 = vmatpush1.xpose.msra.mxu0 0.0
    %1816 = vmatprep.subr.mxu0 0.0
    %1817 = vmatpush1.xpose.msra.mxu0 0.0
    %1818 = vmatprep.subr.mxu0 0.0
    %1819 = vmatpush1.xpose.msra.mxu0 0.0
    %1820 = vmatprep.subr.mxu0 0.0
    %1821 = vmatpush1.xpose.msra.mxu0 0.0
    %1822 = vmatprep.subr.mxu0 0.0
    %1823 = vmatpush1.xpose.msra.mxu0 0.0
    %1824 = vmatprep.subr.mxu0 0.0
    %1825 = vmatpush1.xpose.msra.mxu0 0.0
    %1826 = vmatprep.subr.mxu0 0.0
    %1827 = vmatpush1.xpose.msra.mxu0 0.0
    %1828 = vmatprep.subr.mxu0 0.0
    %1829 = vmatpush1.xpose.msra.mxu0 0.0
    %1830 = vmatprep.subr.mxu0 0.0
    %1831 = vmatpush1.xpose.msra.mxu0 0.0
    %1832 = vmatprep.subr.mxu0 0.0
    %1833 = vmatpush1.xpose.msra.mxu0 0.0
    %1834 = vmatprep.subr.mxu0 0.0
    %1835 = vmatpush1.xpose.msra.mxu0 0.0
    %1836 = vmatprep.subr.mxu0 0.0
    %1837 = vmatpush1.xpose.msra.mxu0 0.0
    %1838 = vmatprep.subr.mxu0 0.0
    %1839 = vmatpush1.xpose.msra.mxu0 0.0
    %1840 = vmatprep.subr.mxu0 0.0
    %1841 = vmatpush1.xpose.msra.mxu0 0.0
    %1842 = vmatprep.subr.mxu0 0.0
    %1843 = vmatpush1.xpose.msra.mxu0 0.0
    %1844 = vmatprep.subr.mxu0 0.0
    %1845 = vmatpush1.xpose.msra.mxu0 0.0
    %1846 = vmatprep.subr.mxu0 0.0
    %1847 = vmatpush1.xpose.msra.mxu0 0.0
    %1848 = vmatprep.subr.mxu0 0.0
    %1849 = vmatpush1.xpose.msra.mxu0 0.0
    %1850 = vmatprep.subr.mxu0 0.0
    %1851 = vmatpush1.xpose.msra.mxu0 0.0
    %1852 = vmatprep.subr.mxu0 0.0
    %1853 = vmatpush1.xpose.msra.mxu0 0.0
    %1854 = vmatprep.subr.mxu0 0.0
    %1855 = vmatpush1.xpose.msra.mxu0 0.0
    %1856 = vmatprep.subr.mxu0 0.0
    %1857 = vmatpush1.xpose.msra.mxu0 0.0
    %1858 = vmatprep.subr.mxu0 0.0
    %1859 = vmatpush1.xpose.msra.mxu0 0.0
    %1860 = vmatprep.subr.mxu0 0.0
    %1861 = vmatpush1.xpose.msra.mxu0 0.0
    %1862 = vmatprep.subr.mxu0 0.0
    %1863 = vmatpush1.xpose.msra.mxu0 0.0
    %1864 = vmatprep.subr.mxu0 0.0
    %1865 = vmatpush1.xpose.msra.mxu0 0.0
    %1866 = vmatprep.subr.mxu0 0.0
    %1867 = vmatpush1.xpose.msra.mxu0 0.0
    %1868 = vmatprep.subr.mxu0 0.0
    %1869 = vmatpush1.xpose.msra.mxu0 0.0
    %1870 = vmatprep.subr.mxu0 0.0
    %1871 = vmatpush1.xpose.msra.mxu0 0.0
    %1872 = vmatprep.subr.mxu0 0.0
    %1873 = vmatpush1.xpose.msra.mxu0 0.0
    %1874 = vmatprep.subr.mxu0 0.0
    %1875 = vmatpush1.xpose.msra.mxu0 0.0
    %1876 = vmatprep.mubr.f32.mxu0 0.0
    %1877 = vmatmul.mubr.f32.gmra.mrb[0].mxu0 %v1808
    %v1878 = vpop.f32.mrb[0].mxu0
    %v1879 = vadd.f32 0.0, %v1878
    %v1880 = vpop.f32.mrb[0].mxu0
    %1881 = vdwg.mxu0
    %v1882 = vsel %vm373, %v1879, -inf
    %1883 = vmax.xlane.f32.xlu0 %v1882
    %v1884 = vpop.xlane.xlu0 %1883
    %v1885 = vsub.f32 %v1879, %v1884
    %v1886 = vmul.f32 %v1885, 1.442695
    %v1887 = vpow.pop %v1886
    %v1888 = vsel %vm373, %v1887, 0.0
    %1889 = vadd.xlane.f32.xlu0 %v1888
    %v1890 = vpop.xlane.xlu0 %1889
    %1891 = vrot.lane.b32.xlu0 %v365, 112
    %v1892 = vpop.permute.xlu0 %1891
    %v1895 = vsel %vm373, %v1887, 0
    %1897 = vmatprep.subr.mxu0 0.0
    %1898 = vmatpush1.msra.mxu0 %v1892
    %1899 = vmatprep.subr.mxu0 0.0
    %1900 = vmatpush1.msra.mxu0 0.0
    %1901 = vmatprep.subr.mxu0 0.0
    %1902 = vmatpush1.msra.mxu0 0.0
    %1903 = vmatprep.subr.mxu0 0.0
    %1904 = vmatpush1.msra.mxu0 0.0
    %1905 = vmatprep.subr.mxu0 0.0
    %1906 = vmatpush1.msra.mxu0 0.0
    %1907 = vmatprep.subr.mxu0 0.0
    %1908 = vmatpush1.msra.mxu0 0.0
    %1909 = vmatprep.subr.mxu0 0.0
    %1910 = vmatpush1.msra.mxu0 0.0
    %1911 = vmatprep.subr.mxu0 0.0
    %1912 = vmatpush1.msra.mxu0 0.0
    %1913 = vmatprep.subr.mxu0 0.0
    %1914 = vmatpush1.msra.mxu0 0.0
    %1915 = vmatprep.subr.mxu0 0.0
    %1916 = vmatpush1.msra.mxu0 0.0
    %1917 = vmatprep.subr.mxu0 0.0
    %1918 = vmatpush1.msra.mxu0 0.0
    %1919 = vmatprep.subr.mxu0 0.0
    %1920 = vmatpush1.msra.mxu0 0.0
    %1921 = vmatprep.subr.mxu0 0.0
    %1922 = vmatpush1.msra.mxu0 0.0
    %1923 = vmatprep.subr.mxu0 0.0
    %1924 = vmatpush1.msra.mxu0 0.0
    %1925 = vmatprep.subr.mxu0 0.0
    %1926 = vmatpush1.msra.mxu0 0.0
    %1927 = vmatprep.subr.mxu0 0.0
    %1928 = vmatpush1.msra.mxu0 0.0
    %1929 = vmatprep.subr.mxu0 0.0
    %1930 = vmatpush1.msra.mxu0 0.0
    %1931 = vmatprep.subr.mxu0 0.0
    %1932 = vmatpush1.msra.mxu0 0.0
    %1933 = vmatprep.subr.mxu0 0.0
    %1934 = vmatpush1.msra.mxu0 0.0
    %1935 = vmatprep.subr.mxu0 0.0
    %1936 = vmatpush1.msra.mxu0 0.0
    %1937 = vmatprep.subr.mxu0 0.0
    %1938 = vmatpush1.msra.mxu0 0.0
    %1939 = vmatprep.subr.mxu0 0.0
    %1940 = vmatpush1.msra.mxu0 0.0
    %1941 = vmatprep.subr.mxu0 0.0
    %1942 = vmatpush1.msra.mxu0 0.0
    %1943 = vmatprep.subr.mxu0 0.0
    %1944 = vmatpush1.msra.mxu0 0.0
    %1945 = vmatprep.subr.mxu0 0.0
    %1946 = vmatpush1.msra.mxu0 0.0
    %1947 = vmatprep.subr.mxu0 0.0
    %1948 = vmatpush1.msra.mxu0 0.0
    %1949 = vmatprep.subr.mxu0 0.0
    %1950 = vmatpush1.msra.mxu0 0.0
    %1951 = vmatprep.subr.mxu0 0.0
    %1952 = vmatpush1.msra.mxu0 0.0
    %1953 = vmatprep.subr.mxu0 0.0
    %1954 = vmatpush1.msra.mxu0 0.0
    %1955 = vmatprep.subr.mxu0 0.0
    %1956 = vmatpush1.msra.mxu0 0.0
    %1957 = vmatprep.subr.mxu0 0.0
    %1958 = vmatpush1.msra.mxu0 0.0
    %1959 = vmatprep.subr.mxu0 0.0
    %1960 = vmatpush1.msra.mxu0 0.0
    %1961 = vmatprep.mubr.f32.mxu0 0.0
    %1962 = vmatmul.mubr.f32.gmra.mrb[0].mxu0 %v1895
    %v1963 = vpop.f32.mrb[0].mxu0
    %v1964 = vadd.f32 0.0, %v1963
    %v1965 = vpop.f32.mrb[0].mxu0
    %1966 = vdwg.mxu0
    %v1967 = vrcp.pop %v1890
    %v1968 = vmul.f32 %v1964, %v1967
    %v1970 = vsel %vm373, %v1968, 0
    %1972 = vmatprep.subr.mxu0 0.0
    %1973 = vmatpush1.msra.mxu0 %v370
    %1974 = vmatprep.subr.mxu0 0.0
    %1975 = vmatpush1.msra.mxu0 0.0
    %1976 = vmatprep.subr.mxu0 0.0
    %1977 = vmatpush1.msra.mxu0 0.0
    %1978 = vmatprep.subr.mxu0 0.0
    %1979 = vmatpush1.msra.mxu0 0.0
    %1980 = vmatprep.subr.mxu0 0.0
    %1981 = vmatpush1.msra.mxu0 0.0
    %1982 = vmatprep.subr.mxu0 0.0
    %1983 = vmatpush1.msra.mxu0 0.0
    %1984 = vmatprep.subr.mxu0 0.0
    %1985 = vmatpush1.msra.mxu0 0.0
    %1986 = vmatprep.subr.mxu0 0.0
    %1987 = vmatpush1.msra.mxu0 0.0
    %1988 = vmatprep.subr.mxu0 0.0
    %1989 = vmatpush1.msra.mxu0 0.0
    %1990 = vmatprep.subr.mxu0 0.0
    %1991 = vmatpush1.msra.mxu0 0.0
    %1992 = vmatprep.subr.mxu0 0.0
    %1993 = vmatpush1.msra.mxu0 0.0
    %1994 = vmatprep.subr.mxu0 0.0
    %1995 = vmatpush1.msra.mxu0 0.0
    %1996 = vmatprep.subr.mxu0 0.0
    %1997 = vmatpush1.msra.mxu0 0.0
    %1998 = vmatprep.subr.mxu0 0.0
    %1999 = vmatpush1.msra.mxu0 0.0
    %2000 = vmatprep.subr.mxu0 0.0
    %2001 = vmatpush1.msra.mxu0 0.0
    %2002 = vmatprep.subr.mxu0 0.0
    %2003 = vmatpush1.msra.mxu0 0.0
    %2004 = vmatprep.subr.mxu0 0.0
    %2005 = vmatpush1.msra.mxu0 0.0
    %2006 = vmatprep.subr.mxu0 0.0
    %2007 = vmatpush1.msra.mxu0 0.0
    %2008 = vmatprep.subr.mxu0 0.0
    %2009 = vmatpush1.msra.mxu0 0.0
    %2010 = vmatprep.subr.mxu0 0.0
    %2011 = vmatpush1.msra.mxu0 0.0
    %2012 = vmatprep.subr.mxu0 0.0
    %2013 = vmatpush1.msra.mxu0 0.0
    %2014 = vmatprep.subr.mxu0 0.0
    %2015 = vmatpush1.msra.mxu0 0.0
    %2016 = vmatprep.subr.mxu0 0.0
    %2017 = vmatpush1.msra.mxu0 0.0
    %2018 = vmatprep.subr.mxu0 0.0
    %2019 = vmatpush1.msra.mxu0 0.0
    %2020 = vmatprep.subr.mxu0 0.0
    %2021 = vmatpush1.msra.mxu0 0.0
    %2022 = vmatprep.subr.mxu0 0.0
    %2023 = vmatpush1.msra.mxu0 0.0
    %2024 = vmatprep.subr.mxu0 0.0
    %2025 = vmatpush1.msra.mxu0 0.0
    %2026 = vmatprep.subr.mxu0 0.0
    %2027 = vmatpush1.msra.mxu0 0.0
    %2028 = vmatprep.subr.mxu0 0.0
    %2029 = vmatpush1.msra.mxu0 0.0
    %2030 = vmatprep.subr.mxu0 0.0
    %2031 = vmatpush1.msra.mxu0 0.0
    %2032 = vmatprep.subr.mxu0 0.0
    %2033 = vmatpush1.msra.mxu0 0.0
    %2034 = vmatprep.subr.mxu0 0.0
    %2035 = vmatpush1.msra.mxu0 0.0
    %2036 = vmatprep.mubr.f32.mxu0 0.0
    %2037 = vmatmul.mubr.f32.gmra.mrb[0].mxu0 %v1970
    %v2038 = vpop.f32.mrb[0].mxu0
    %v2039 = vadd.f32 0.0, %v2038
    %v2040 = vpop.f32.mrb[0].mxu0
    %2041 = vdwg.mxu0
    %v2042 = vadd.f32 %v1801, %v2039
    %2043 = vrot.lane.b32.xlu0 %v193, 104
    %v2044 = vpop.permute.xlu0 %2043
    %2045 = vrot.lane.b32.xlu0 %v279, 104
    %v2046 = vpop.permute.xlu0 %2045
    %v2047 = vsel %vm373, %v2044, 0
    %v2049 = vsel %vm373, %v2046, 0
    %2051 = vmatprep.subr.mxu0 0.0
    %2052 = vmatpush1.xpose.msra.mxu0 %v2049
    %2053 = vmatprep.subr.mxu0 0.0
    %2054 = vmatpush1.xpose.msra.mxu0 0.0
    %2055 = vmatprep.subr.mxu0 0.0
    %2056 = vmatpush1.xpose.msra.mxu0 0.0
    %2057 = vmatprep.subr.mxu0 0.0
    %2058 = vmatpush1.xpose.msra.mxu0 0.0
    %2059 = vmatprep.subr.mxu0 0.0
    %2060 = vmatpush1.xpose.msra.mxu0 0.0
    %2061 = vmatprep.subr.mxu0 0.0
    %2062 = vmatpush1.xpose.msra.mxu0 0.0
    %2063 = vmatprep.subr.mxu0 0.0
    %2064 = vmatpush1.xpose.msra.mxu0 0.0
    %2065 = vmatprep.subr.mxu0 0.0
    %2066 = vmatpush1.xpose.msra.mxu0 0.0
    %2067 = vmatprep.subr.mxu0 0.0
    %2068 = vmatpush1.xpose.msra.mxu0 0.0
    %2069 = vmatprep.subr.mxu0 0.0
    %2070 = vmatpush1.xpose.msra.mxu0 0.0
    %2071 = vmatprep.subr.mxu0 0.0
    %2072 = vmatpush1.xpose.msra.mxu0 0.0
    %2073 = vmatprep.subr.mxu0 0.0
    %2074 = vmatpush1.xpose.msra.mxu0 0.0
    %2075 = vmatprep.subr.mxu0 0.0
    %2076 = vmatpush1.xpose.msra.mxu0 0.0
    %2077 = vmatprep.subr.mxu0 0.0
    %2078 = vmatpush1.xpose.msra.mxu0 0.0
    %2079 = vmatprep.subr.mxu0 0.0
    %2080 = vmatpush1.xpose.msra.mxu0 0.0
    %2081 = vmatprep.subr.mxu0 0.0
    %2082 = vmatpush1.xpose.msra.mxu0 0.0
    %2083 = vmatprep.subr.mxu0 0.0
    %2084 = vmatpush1.xpose.msra.mxu0 0.0
    %2085 = vmatprep.subr.mxu0 0.0
    %2086 = vmatpush1.xpose.msra.mxu0 0.0
    %2087 = vmatprep.subr.mxu0 0.0
    %2088 = vmatpush1.xpose.msra.mxu0 0.0
    %2089 = vmatprep.subr.mxu0 0.0
    %2090 = vmatpush1.xpose.msra.mxu0 0.0
    %2091 = vmatprep.subr.mxu0 0.0
    %2092 = vmatpush1.xpose.msra.mxu0 0.0
    %2093 = vmatprep.subr.mxu0 0.0
    %2094 = vmatpush1.xpose.msra.mxu0 0.0
    %2095 = vmatprep.subr.mxu0 0.0
    %2096 = vmatpush1.xpose.msra.mxu0 0.0
    %2097 = vmatprep.subr.mxu0 0.0
    %2098 = vmatpush1.xpose.msra.mxu0 0.0
    %2099 = vmatprep.subr.mxu0 0.0
    %2100 = vmatpush1.xpose.msra.mxu0 0.0
    %2101 = vmatprep.subr.mxu0 0.0
    %2102 = vmatpush1.xpose.msra.mxu0 0.0
    %2103 = vmatprep.subr.mxu0 0.0
    %2104 = vmatpush1.xpose.msra.mxu0 0.0
    %2105 = vmatprep.subr.mxu0 0.0
    %2106 = vmatpush1.xpose.msra.mxu0 0.0
    %2107 = vmatprep.subr.mxu0 0.0
    %2108 = vmatpush1.xpose.msra.mxu0 0.0
    %2109 = vmatprep.subr.mxu0 0.0
    %2110 = vmatpush1.xpose.msra.mxu0 0.0
    %2111 = vmatprep.subr.mxu0 0.0
    %2112 = vmatpush1.xpose.msra.mxu0 0.0
    %2113 = vmatprep.subr.mxu0 0.0
    %2114 = vmatpush1.xpose.msra.mxu0 0.0
    %2115 = vmatprep.mubr.f32.mxu0 0.0
    %2116 = vmatmul.mubr.f32.gmra.mrb[0].mxu0 %v2047
    %v2117 = vpop.f32.mrb[0].mxu0
    %v2118 = vadd.f32 0.0, %v2117
    %v2119 = vpop.f32.mrb[0].mxu0
    %2120 = vdwg.mxu0
    %v2121 = vsel %vm373, %v2118, -inf
    %2122 = vmax.xlane.f32.xlu0 %v2121
    %v2123 = vpop.xlane.xlu0 %2122
    %v2124 = vsub.f32 %v2118, %v2123
    %v2125 = vmul.f32 %v2124, 1.442695
    %v2126 = vpow.pop %v2125
    %v2127 = vsel %vm373, %v2126, 0.0
    %2128 = vadd.xlane.f32.xlu0 %v2127
    %v2129 = vpop.xlane.xlu0 %2128
    %2130 = vrot.lane.b32.xlu0 %v365, 104
    %v2131 = vpop.permute.xlu0 %2130
    %v2134 = vsel %vm373, %v2126, 0
    %2136 = vmatprep.subr.mxu0 0.0
    %2137 = vmatpush1.msra.mxu0 %v2131
    %2138 = vmatprep.subr.mxu0 0.0
    %2139 = vmatpush1.msra.mxu0 0.0
    %2140 = vmatprep.subr.mxu0 0.0
    %2141 = vmatpush1.msra.mxu0 0.0
    %2142 = vmatprep.subr.mxu0 0.0
    %2143 = vmatpush1.msra.mxu0 0.0
    %2144 = vmatprep.subr.mxu0 0.0
    %2145 = vmatpush1.msra.mxu0 0.0
    %2146 = vmatprep.subr.mxu0 0.0
    %2147 = vmatpush1.msra.mxu0 0.0
    %2148 = vmatprep.subr.mxu0 0.0
    %2149 = vmatpush1.msra.mxu0 0.0
    %2150 = vmatprep.subr.mxu0 0.0
    %2151 = vmatpush1.msra.mxu0 0.0
    %2152 = vmatprep.subr.mxu0 0.0
    %2153 = vmatpush1.msra.mxu0 0.0
    %2154 = vmatprep.subr.mxu0 0.0
    %2155 = vmatpush1.msra.mxu0 0.0
    %2156 = vmatprep.subr.mxu0 0.0
    %2157 = vmatpush1.msra.mxu0 0.0
    %2158 = vmatprep.subr.mxu0 0.0
    %2159 = vmatpush1.msra.mxu0 0.0
    %2160 = vmatprep.subr.mxu0 0.0
    %2161 = vmatpush1.msra.mxu0 0.0
    %2162 = vmatprep.subr.mxu0 0.0
    %2163 = vmatpush1.msra.mxu0 0.0
    %2164 = vmatprep.subr.mxu0 0.0
    %2165 = vmatpush1.msra.mxu0 0.0
    %2166 = vmatprep.subr.mxu0 0.0
    %2167 = vmatpush1.msra.mxu0 0.0
    %2168 = vmatprep.subr.mxu0 0.0
    %2169 = vmatpush1.msra.mxu0 0.0
    %2170 = vmatprep.subr.mxu0 0.0
    %2171 = vmatpush1.msra.mxu0 0.0
    %2172 = vmatprep.subr.mxu0 0.0
    %2173 = vmatpush1.msra.mxu0 0.0
    %2174 = vmatprep.subr.mxu0 0.0
    %2175 = vmatpush1.msra.mxu0 0.0
    %2176 = vmatprep.subr.mxu0 0.0
    %2177 = vmatpush1.msra.mxu0 0.0
    %2178 = vmatprep.subr.mxu0 0.0
    %2179 = vmatpush1.msra.mxu0 0.0
    %2180 = vmatprep.subr.mxu0 0.0
    %2181 = vmatpush1.msra.mxu0 0.0
    %2182 = vmatprep.subr.mxu0 0.0
    %2183 = vmatpush1.msra.mxu0 0.0
    %2184 = vmatprep.subr.mxu0 0.0
    %2185 = vmatpush1.msra.mxu0 0.0
    %2186 = vmatprep.subr.mxu0 0.0
    %2187 = vmatpush1.msra.mxu0 0.0
    %2188 = vmatprep.subr.mxu0 0.0
    %2189 = vmatpush1.msra.mxu0 0.0
    %2190 = vmatprep.subr.mxu0 0.0
    %2191 = vmatpush1.msra.mxu0 0.0
    %2192 = vmatprep.subr.mxu0 0.0
    %2193 = vmatpush1.msra.mxu0 0.0
    %2194 = vmatprep.subr.mxu0 0.0
    %2195 = vmatpush1.msra.mxu0 0.0
    %2196 = vmatprep.subr.mxu0 0.0
    %2197 = vmatpush1.msra.mxu0 0.0
    %2198 = vmatprep.subr.mxu0 0.0
    %2199 = vmatpush1.msra.mxu0 0.0
    %2200 = vmatprep.mubr.f32.mxu0 0.0
    %2201 = vmatmul.mubr.f32.gmra.mrb[0].mxu0 %v2134
    %v2202 = vpop.f32.mrb[0].mxu0
    %v2203 = vadd.f32 0.0, %v2202
    %v2204 = vpop.f32.mrb[0].mxu0
    %2205 = vdwg.mxu0
    %v2206 = vrcp.pop %v2129
    %v2207 = vmul.f32 %v2203, %v2206
    %v2209 = vsel %vm373, %v2207, 0
    %2211 = vmatprep.subr.mxu0 0.0
    %2212 = vmatpush1.msra.mxu0 %v371
    %2213 = vmatprep.subr.mxu0 0.0
    %2214 = vmatpush1.msra.mxu0 0.0
    %2215 = vmatprep.subr.mxu0 0.0
    %2216 = vmatpush1.msra.mxu0 0.0
    %2217 = vmatprep.subr.mxu0 0.0
    %2218 = vmatpush1.msra.mxu0 0.0
    %2219 = vmatprep.subr.mxu0 0.0
    %2220 = vmatpush1.msra.mxu0 0.0
    %2221 = vmatprep.subr.mxu0 0.0
    %2222 = vmatpush1.msra.mxu0 0.0
    %2223 = vmatprep.subr.mxu0 0.0
    %2224 = vmatpush1.msra.mxu0 0.0
    %2225 = vmatprep.subr.mxu0 0.0
    %2226 = vmatpush1.msra.mxu0 0.0
    %2227 = vmatprep.subr.mxu0 0.0
    %2228 = vmatpush1.msra.mxu0 0.0
    %2229 = vmatprep.subr.mxu0 0.0
    %2230 = vmatpush1.msra.mxu0 0.0
    %2231 = vmatprep.subr.mxu0 0.0
    %2232 = vmatpush1.msra.mxu0 0.0
    %2233 = vmatprep.subr.mxu0 0.0
    %2234 = vmatpush1.msra.mxu0 0.0
    %2235 = vmatprep.subr.mxu0 0.0
    %2236 = vmatpush1.msra.mxu0 0.0
    %2237 = vmatprep.subr.mxu0 0.0
    %2238 = vmatpush1.msra.mxu0 0.0
    %2239 = vmatprep.subr.mxu0 0.0
    %2240 = vmatpush1.msra.mxu0 0.0
    %2241 = vmatprep.subr.mxu0 0.0
    %2242 = vmatpush1.msra.mxu0 0.0
    %2243 = vmatprep.subr.mxu0 0.0
    %2244 = vmatpush1.msra.mxu0 0.0
    %2245 = vmatprep.subr.mxu0 0.0
    %2246 = vmatpush1.msra.mxu0 0.0
    %2247 = vmatprep.subr.mxu0 0.0
    %2248 = vmatpush1.msra.mxu0 0.0
    %2249 = vmatprep.subr.mxu0 0.0
    %2250 = vmatpush1.msra.mxu0 0.0
    %2251 = vmatprep.subr.mxu0 0.0
    %2252 = vmatpush1.msra.mxu0 0.0
    %2253 = vmatprep.subr.mxu0 0.0
    %2254 = vmatpush1.msra.mxu0 0.0
    %2255 = vmatprep.subr.mxu0 0.0
    %2256 = vmatpush1.msra.mxu0 0.0
    %2257 = vmatprep.subr.mxu0 0.0
    %2258 = vmatpush1.msra.mxu0 0.0
    %2259 = vmatprep.subr.mxu0 0.0
    %2260 = vmatpush1.msra.mxu0 0.0
    %2261 = vmatprep.subr.mxu0 0.0
    %2262 = vmatpush1.msra.mxu0 0.0
    %2263 = vmatprep.subr.mxu0 0.0
    %2264 = vmatpush1.msra.mxu0 0.0
    %2265 = vmatprep.subr.mxu0 0.0
    %2266 = vmatpush1.msra.mxu0 0.0
    %2267 = vmatprep.subr.mxu0 0.0
    %2268 = vmatpush1.msra.mxu0 0.0
    %2269 = vmatprep.subr.mxu0 0.0
    %2270 = vmatpush1.msra.mxu0 0.0
    %2271 = vmatprep.subr.mxu0 0.0
    %2272 = vmatpush1.msra.mxu0 0.0
    %2273 = vmatprep.subr.mxu0 0.0
    %2274 = vmatpush1.msra.mxu0 0.0
    %2275 = vmatprep.mubr.f32.mxu0 0.0
    %2276 = vmatmul.mubr.f32.gmra.mrb[0].mxu0 %v2209
    %v2277 = vpop.f32.mrb[0].mxu0
    %v2278 = vadd.f32 0.0, %v2277
    %v2279 = vpop.f32.mrb[0].mxu0
    %2280 = vdwg.mxu0
    %v2281 = vadd.f32 %v2042, %v2278
    %v2282 = vadd.f32 %v2281, %v1328
    %2283 = vst.msk [vmem:[#allocation11 + $0x8] sm:$0xff] %vm114, %v2282
    // Predicated region
    $region58: #{tpu_custom_call.1} parent=1 // pred_check
      _
    $region59: #{tpu_custom_call.1} parent=1 // pred_check_branch
      %2285 = sbr.rel (0) target = $region61
    $region60: #{tpu_custom_call.1} parent=1 // pred_region
      %s2287 = ssub.s32 256, 256
      %2288 = vsyncadd [#allocation4], %s2287
      %s2289 = sshll.u32 [#allocation11], 4
      %s2290 = int_to_ptr.vmem [resolvable:$true] %s2289
      %2295 = dma.vmem_to_hbm [thread:$0]  %s2290, 256, %s9, [#allocation4], 128, 128, 8
    $region61: #{tpu_custom_call.1} parent=1 // pred_fallthru
      _
    // Predicated region
    $region62: #{tpu_custom_call.1} parent=1 // pred_check
      _
    $region63: #{tpu_custom_call.1} parent=1 // pred_check_branch
      %2297 = sbr.rel (0) target = $region65
    $region64: #{tpu_custom_call.1} parent=1 // pred_region
      %2298 = dma.done [#allocation4], 256
    $region65: #{tpu_custom_call.1} parent=1 // pred_fallthru
      _
    %2299 = vsyncpa [#allocation3], 1
    %2300 = vsyncpa [#allocation6], 1
    %2301 = vsyncpa [#allocation9], 1
    %2302 = vsyncpa [#allocation4], 1

</llo_original>
